<compile_context>
chip_gen: v7x
topology: tpu7x:2x2x1
jax: 0.10.0
libtpu: 0.0.40
codegen_flags: <defaults>
</compile_context>

<pallas_src>
import functools

import jax
import jax.numpy as jnp
import numpy as np
from jax.experimental import pallas as pl
from jax.experimental.pallas import tpu as pltpu

BN_EPS = 1e-5


# ----------------------------------------------------------------------------
# helpers
# ----------------------------------------------------------------------------
def fold_bn(gamma, beta, mean, var):
    scale = gamma / jnp.sqrt(var + BN_EPS)
    shift = beta - mean * scale
    return scale.reshape(1, -1), shift.reshape(1, -1)


def _pick_row_tile(H, W, stride):
    """Largest proper divisor of H (multiple of stride) with <= 2048 flat rows.

    A proper divisor guarantees >= 2 row stripes per image, so the grid always
    has >= 2 steps even for N == 1 (keeps both v7x TensorCores busy) and the
    per-stripe f32 accumulator stays small."""
    for d in range(H - 1, 0, -1):
        if H % d == 0 and d % stride == 0 and d * W <= 2048:
            return d
    return H


def _vmem_budget(block_bytes):
    """Scoped-VMEM request derived from actual tile bytes (v7x has only
    64 MiB physical / 32 MiB default scoped VMEM, unlike v5e/v6e's 128 MiB)."""
    need = 2 * int(block_bytes) + (4 << 20)          # double buffers + headroom
    cap = 96 << 20
    try:
        cap = int(pltpu.get_tpu_info().vmem_capacity_bytes) // 2
    except Exception:
        pass
    return int(max(16 << 20, min(need, cap)))


# ----------------------------------------------------------------------------
# The fully fused Block kernel.
#   grid = (N, R)     R = H // TH row stripes per image
#   r == 0 : conv1+bn1+relu for the whole image -> zero-padded VMEM scratch
#   every r: grouped 3x3 conv2 (one K=9*gw matmul) + bn2 + relu,
#            conv3 + bn3 (+ projection shortcut) + final relu, bf16 store.
# ----------------------------------------------------------------------------
def _block_kernel(*refs, H, W, Cin, gw, cexp, TH, stride, proj):
    if proj:
        (x_ref, w1_ref, b1_ref, w2_ref, b2_ref,
         w3_ref, wsc_ref, b3_ref, o_ref, a1_pad) = refs
    else:
        (x_ref, w1_ref, b1_ref, w2_ref, b2_ref,
         w3_ref, b3_ref, o_ref, a1_pad) = refs
        wsc_ref = None

    r = pl.program_id(1)

    # ---- conv1 (1x1) + bn1 + relu, whole image, once per batch element ----
    @pl.when(r == 0)
    def _():
        a1 = jnp.dot(x_ref[0], w1_ref[...], preferred_element_type=jnp.float32)
        a1 = jnp.maximum(a1 + b1_ref[...], 0.0).astype(a1_pad.dtype)
        a1 = a1.reshape(H, W, gw)
        zc = jnp.zeros((H, 1, gw), a1.dtype)
        a1 = jnp.concatenate([zc, a1, zc], axis=1)            # (H, W+2, gw)
        zr = jnp.zeros((1, W + 2, gw), a1.dtype)
        a1_pad[...] = jnp.concatenate([zr, a1, zr], axis=0)   # (H+2, W+2, gw)

    # ---- conv2: grouped 3x3 as ONE K = 9*gw matmul over a VMEM patch ----
    r0 = pl.multiple_of(r * TH, TH)
    taps = [a1_pad[pl.ds(r0 + kh, TH), kw:kw + W, :]
            for kh in range(3) for kw in range(3)]
    patch = jnp.concatenate(taps, axis=-1).reshape(TH * W, 9 * gw)
    a2 = jnp.dot(patch, w2_ref[...], preferred_element_type=jnp.float32)
    a2 = jnp.maximum(a2 + b2_ref[...], 0.0).astype(jnp.bfloat16)

    # ---- shortcut input stripe (stays in VMEM, never re-read from HBM) ----
    rflat = pl.multiple_of(r * (TH * W), TH * W)
    xs = x_ref[0, pl.ds(rflat, TH * W), :]

    if stride != 1:
        # TODO(synk): stride-1 conv2 rows are computed then subsampled in VMEM
        # (no extra HBM traffic, but stride^2 extra MXU work).
        Wo = (W - 1) // stride + 1
        THo = TH // stride
        a2 = a2.reshape(TH, W, gw)[::stride, ::stride, :].reshape(THo * Wo, gw)
        xs = xs.reshape(TH, W, Cin)[::stride, ::stride, :].reshape(THo * Wo, Cin)

    # ---- conv3 (1x1) + bn3 (+ shortcut) + final relu ----
    a3 = jnp.dot(a2, w3_ref[...], preferred_element_type=jnp.float32)
    if proj:
        a3 = a3 + jnp.dot(xs, wsc_ref[...], preferred_element_type=jnp.float32)
    else:
        a3 = a3 + xs.astype(jnp.float32)
    a3 = jnp.maximum(a3 + b3_ref[...], 0.0)
    # TODO(synk): cexp < 128 here -> masked (non lane-dense) stores; pack
    # channels for production configs where cexp is still below 128.
    o_ref[0] = a3.astype(o_ref.dtype)


def block_forward(x_nchw, p, *, stride=1):
    N, Cin, H, W = x_nchw.shape
    gw = p["w1"].shape[1]
    cexp = p["w3"].shape[1]
    proj = (stride != 1) or (Cin != cexp)
    Ho = (H - 1) // stride + 1
    Wo = (W - 1) // stride + 1

    TH = _pick_row_tile(H, W, stride)
    R = H // TH
    THo = TH // stride

    # NHWC bf16, flattened rows (free reshapes; all conv padding happens in VMEM)
    x = jnp.transpose(x_nchw, (0, 2, 3, 1)).astype(jnp.bfloat16)
    x = x.reshape(N, H * W, Cin)

    kernel = functools.partial(_block_kernel, H=H, W=W, Cin=Cin, gw=gw,
                               cexp=cexp, TH=TH, stride=stride, proj=proj)

    in_specs = [
        pl.BlockSpec((1, H * W, Cin), lambda n, r: (n, 0, 0)),
        pl.BlockSpec((Cin, gw), lambda n, r: (0, 0)),
        pl.BlockSpec((1, gw), lambda n, r: (0, 0)),
        pl.BlockSpec((9 * gw, gw), lambda n, r: (0, 0)),
        pl.BlockSpec((1, gw), lambda n, r: (0, 0)),
        pl.BlockSpec((gw, cexp), lambda n, r: (0, 0)),
    ]
    args = [x, p["w1"], p["b1"], p["w2p"], p["b2"], p["w3"]]
    if proj:
        in_specs.append(pl.BlockSpec((Cin, cexp), lambda n, r: (0, 0)))
        args.append(p["wsc"])
        b_last = p["b3"] + p["bsc"]
    else:
        b_last = p["b3"]
    in_specs.append(pl.BlockSpec((1, cexp), lambda n, r: (0, 0)))
    args.append(b_last)

    bytes_in = 2 * (H * W * Cin + 9 * gw * gw + Cin * gw + gw * cexp
                    + (Cin * cexp if proj else 0)) + 4 * (2 * gw + cexp)
    bytes_out = 2 * THo * Wo * cexp
    bytes_scr = 2 * (H + 2) * (W + 2) * gw

    out = pl.pallas_call(
        kernel,
        out_shape=jax.ShapeDtypeStruct((N, Ho * Wo, cexp), jnp.bfloat16),
        grid_spec=pltpu.PrefetchScalarGridSpec(
            num_scalar_prefetch=0,
            grid=(N, R),
            in_specs=in_specs,
            out_specs=pl.BlockSpec((1, THo * Wo, cexp), lambda n, r: (n, r, 0)),
            scratch_shapes=[pltpu.VMEM((H + 2, W + 2, gw), jnp.bfloat16)],
        ),
        compiler_params=pltpu.CompilerParams(
            dimension_semantics=("parallel", "arbitrary"),
            vmem_limit_bytes=_vmem_budget(bytes_in + bytes_out + bytes_scr)),
    )(*args)

    # Module-boundary conversion back to NCHW f32 (PyTorch parity).
    out = out.reshape(N, Ho, Wo, cexp)
    return jnp.transpose(out, (0, 3, 1, 2)).astype(jnp.float32)


# ----------------------------------------------------------------------------
# Parameters (torch-style shapes) and one-time folding/packing
# ----------------------------------------------------------------------------
def make_params(key, in_planes, cardinality, bottleneck_width, expansion=2):
    gw = cardinality * bottleneck_width
    cexp = expansion * gw
    k1, k2, k3, k4 = jax.random.split(key, 4)
    w1_t = 0.1 * jax.random.normal(k1, (gw, in_planes, 1, 1), jnp.float32)
    w2_t = 0.1 * jax.random.normal(k2, (gw, gw // cardinality, 3, 3), jnp.float32)
    w3_t = 0.1 * jax.random.normal(k3, (cexp, gw, 1, 1), jnp.float32)
    wsc_t = 0.1 * jax.random.normal(k4, (cexp, in_planes, 1, 1), jnp.float32)

    def bn_stats(c, off):
        idx = jnp.arange(c, dtype=jnp.float32)
        gamma = 1.0 + 0.05 * idx + 0.1 * off
        beta = 0.01 * idx - 0.05 * off
        mean = 0.02 * (idx - c / 2.0)
        var = 1.0 + 0.03 * idx
        return gamma, beta, mean, var

    return {
        "w1_t": w1_t, "w2_t": w2_t, "w3_t": w3_t, "wsc_t": wsc_t,
        "bn1": bn_stats(gw, 0.0), "bn2": bn_stats(gw, 1.0),
        "bn3": bn_stats(cexp, 2.0), "bnsc": bn_stats(cexp, 3.0),
    }


def prepare_params(params, cardinality):
    """One-time, vectorized BN fold + grouped-weight packing (jit-friendly)."""
    gw = params["w1_t"].shape[0]
    cpg = gw // cardinality

    s1, b1 = fold_bn(*params["bn1"])
    s2, b2 = fold_bn(*params["bn2"])
    s3, b3 = fold_bn(*params["bn3"])
    ssc, bsc = fold_bn(*params["bnsc"])

    w1 = jnp.transpose(params["w1_t"][:, :, 0, 0], (1, 0)) * s1      # (Cin, gw)
    w3 = jnp.transpose(params["w3_t"][:, :, 0, 0], (1, 0)) * s3      # (gw, cexp)
    wsc = jnp.transpose(params["wsc_t"][:, :, 0, 0], (1, 0)) * ssc   # (Cin, cexp)

    # Dense block-diagonal grouped weight packed for a single K=9*gw matmul.
    # TODO(synk): for real ResNeXt configs (cardinality=32, gw>=1024) run
    # per-group matmuls instead of densifying (dense form wastes cardinality-x
    # MXU FLOPs and weight VMEM).
    w2 = jnp.transpose(params["w2_t"], (2, 3, 1, 0))                 # (3,3,cpg,gw)
    w2 = w2.reshape(9, cpg, cardinality, cpg)                        # co = g*cpg+o
    eye = jnp.eye(cardinality, dtype=w2.dtype)
    w9 = jnp.einsum("kigo,hg->khigo", w2, eye).reshape(9, gw, gw)
    w9 = w9 * s2                                                     # fold bn2 scale
    w2p = w9.reshape(9 * gw, gw)                                     # (9*gw, gw)

    return {
        "w1": w1.astype(jnp.bfloat16), "b1": b1,
        "w2p": w2p.astype(jnp.bfloat16), "b2": b2,
        "w3": w3.astype(jnp.bfloat16), "b3": b3,
        "wsc": wsc.astype(jnp.bfloat16), "bsc": bsc,
    }


# ----------------------------------------------------------------------------
# Pure-JAX reference (lax convs, f32) for correctness check
# ----------------------------------------------------------------------------
def reference_forward(x_nchw, params, *, cardinality, stride=1, expansion=2):
    x = jnp.transpose(x_nchw, (0, 2, 3, 1))
    Cin = x.shape[-1]
    gw = params["w1_t"].shape[0]
    cexp = expansion * gw

    def conv(x, w_t, stride, padding, groups=1):
        w = jnp.transpose(w_t, (2, 3, 1, 0))  # HWIO
        return jax.lax.conv_general_dilated(
            x, w, window_strides=(stride, stride), padding=padding,
            dimension_numbers=("NHWC", "HWIO", "NHWC"),
            feature_group_count=groups)

    def bn(x, stats):
        gamma, beta, mean, var = stats
        return gamma * (x - mean) / jnp.sqrt(var + BN_EPS) + beta

    out = jax.nn.relu(bn(conv(x, params["w1_t"], 1, "VALID"), params["bn1"]))
    out = jax.nn.relu(bn(conv(out, params["w2_t"], stride, [(1, 1), (1, 1)],
                              groups=cardinality), params["bn2"]))
    out = bn(conv(out, params["w3_t"], 1, "VALID"), params["bn3"])
    if stride != 1 or Cin != cexp:
        sc = bn(conv(x, params["wsc_t"], stride, "VALID"), params["bnsc"])
    else:
        sc = x
    out = jax.nn.relu(out + sc)
    return jnp.transpose(out, (0, 3, 1, 2))


if __name__ == "__main__":
    # small config: in_planes=8, cardinality=4, bottleneck_width=4, stride=1
    in_planes, cardinality, bottleneck_width, stride = 8, 4, 4, 1
    key = jax.random.PRNGKey(0)
    kx, kp = jax.random.split(key)
    x = jax.random.normal(kx, (2, in_planes, 16, 16), jnp.float32)

    params = make_params(kp, in_planes, cardinality, bottleneck_width)
    prepared = prepare_params(params, cardinality)      # folded/packed once

    fwd = jax.jit(functools.partial(block_forward, stride=stride))
    out = jax.block_until_ready(fwd(x, prepared))

    ref = jax.block_until_ready(
        reference_forward(x, params, cardinality=cardinality, stride=stride))

    assert out.shape == (2, 32, 16, 16), out.shape
    # bf16 activations/weights/output with f32 accumulation -> relaxed tolerance.
    np.testing.assert_allclose(np.asarray(out), np.asarray(ref),
                               rtol=2e-2, atol=2e-2)
    print("KERNEL_OK")
</pallas_src>

<mosaic_0001>
module attributes {stable_mosaic.version = 11 : i64} {
  func.func @_block_kernel(%arg0: i32, %arg1: i32, %arg2: memref<1x256x8xbf16, #tpu.memory_space<vmem>>, %arg3: memref<8x16xbf16, #tpu.memory_space<vmem>>, %arg4: memref<1x16xf32, #tpu.memory_space<vmem>>, %arg5: memref<144x16xbf16, #tpu.memory_space<vmem>>, %arg6: memref<1x16xf32, #tpu.memory_space<vmem>>, %arg7: memref<16x32xbf16, #tpu.memory_space<vmem>>, %arg8: memref<8x32xbf16, #tpu.memory_space<vmem>>, %arg9: memref<1x32xf32, #tpu.memory_space<vmem>>, %arg10: memref<1x128x32xbf16, #tpu.memory_space<vmem>>, %arg11: memref<18x18x16xbf16, #tpu.memory_space<vmem>>) attributes {dimension_semantics = [#tpu.dimension_semantics<parallel>, #tpu.dimension_semantics<arbitrary>], iteration_bounds = array<i64: 2, 2>, scalar_prefetch = 0 : i64, scratch_operands = 1 : i64, tpu.core_type = #tpu.core_type<tc>, window_params = [{transform_indices = @transform_0, window_bounds = array<i64: 1, 256, 8>}, {pipeline_mode = #tpu.pipeline_mode<synchronous>, transform_indices = @transform_1, window_bounds = array<i64: 8, 16>}, {pipeline_mode = #tpu.pipeline_mode<synchronous>, transform_indices = @transform_2, window_bounds = array<i64: 1, 16>}, {pipeline_mode = #tpu.pipeline_mode<synchronous>, transform_indices = @transform_3, window_bounds = array<i64: 144, 16>}, {pipeline_mode = #tpu.pipeline_mode<synchronous>, transform_indices = @transform_4, window_bounds = array<i64: 1, 16>}, {pipeline_mode = #tpu.pipeline_mode<synchronous>, transform_indices = @transform_5, window_bounds = array<i64: 16, 32>}, {pipeline_mode = #tpu.pipeline_mode<synchronous>, transform_indices = @transform_6, window_bounds = array<i64: 8, 32>}, {pipeline_mode = #tpu.pipeline_mode<synchronous>, transform_indices = @transform_7, window_bounds = array<i64: 1, 32>}, {transform_indices = @transform_8, window_bounds = array<i64: 1, 128, 32>}]} {
    %c0_i32 = arith.constant 0 : i32
    %0 = arith.cmpi eq, %arg1, %c0_i32 : i32
    %1 = arith.extui %0 : i1 to i32
    %c0_i32_0 = arith.constant 0 : i32
    %2 = arith.cmpi ne, %1, %c0_i32_0 : i32
    scf.if %2 {
      %c0_42 = arith.constant 0 : index
      %c0_43 = arith.constant 0 : index
      %c0_44 = arith.constant 0 : index
      %61 = vector.load %arg2[%c0_42, %c0_43, %c0_44] : memref<1x256x8xbf16, #tpu.memory_space<vmem>>, vector<1x256x8xbf16>
      %62 = vector.shape_cast %61 : vector<1x256x8xbf16> to vector<256x8xbf16>
      %c0_45 = arith.constant 0 : index
      %c0_46 = arith.constant 0 : index
      %63 = vector.load %arg3[%c0_45, %c0_46] : memref<8x16xbf16, #tpu.memory_space<vmem>>, vector<8x16xbf16>
      %cst_47 = arith.constant dense<0.000000e+00> : vector<256x16xf32>
      %64 = tpu.matmul %62, %63, %cst_47 {dimension_numbers = #tpu.dot_dimension_numbers<[1], [0], [0], [1], [0, 0, 1, 1], [], []>} : vector<256x8xbf16>, vector<8x16xbf16>, vector<256x16xf32> -> vector<256x16xf32>
      %c0_48 = arith.constant 0 : index
      %c0_49 = arith.constant 0 : index
      %65 = vector.load %arg4[%c0_48, %c0_49] : memref<1x16xf32, #tpu.memory_space<vmem>>, vector<1x16xf32>
      %66 = vector.broadcast %65 : vector<1x16xf32> to vector<256x16xf32>
      %67 = arith.addf %64, %66 : vector<256x16xf32>
      %cst_50 = arith.constant 0.000000e+00 : f32
      %68 = vector.broadcast %cst_50 : f32 to vector<256x16xf32>
      %69 = arith.maximumf %67, %68 : vector<256x16xf32>
      %70 = arith.truncf %69 : vector<256x16xf32> to vector<256x16xbf16>
      %71 = vector.shape_cast %70 : vector<256x16xbf16> to vector<16x16x16xbf16>
      %cst_51 = arith.constant 0.000000e+00 : bf16
      %72 = vector.broadcast %cst_51 : bf16 to vector<16x1x16xbf16>
      %73 = tpu.concatenate %72, %71, %72 in 1 : vector<16x1x16xbf16>, vector<16x16x16xbf16>, vector<16x1x16xbf16> -> vector<16x18x16xbf16>
      %cst_52 = arith.constant 0.000000e+00 : bf16
      %74 = vector.broadcast %cst_52 : bf16 to vector<1x18x16xbf16>
      %75 = tpu.concatenate %74, %73, %74 in 0 : vector<1x18x16xbf16>, vector<16x18x16xbf16>, vector<1x18x16xbf16> -> vector<18x18x16xbf16>
      %c0_53 = arith.constant 0 : index
      %c0_54 = arith.constant 0 : index
      %c0_55 = arith.constant 0 : index
      %76 = vector.load %arg11[%c0_53, %c0_54, %c0_55] : memref<18x18x16xbf16, #tpu.memory_space<vmem>>, vector<18x18x16xbf16>
      tpu.vector_store %arg11[%c0_53, %c0_54, %c0_55], %75 {strides = array<i32>} : memref<18x18x16xbf16, #tpu.memory_space<vmem>>, vector<18x18x16xbf16>,
    } else {
    }
    %c8_i32 = arith.constant 8 : i32
    %3 = arith.muli %arg1, %c8_i32 : i32
    %4 = tpu.assume_multiple %3, 8 : i32
    %c0_i32_1 = arith.constant 0 : i32
    %5 = arith.addi %4, %c0_i32_1 : i32
    %6 = arith.index_cast %5 : i32 to index
    %c0 = arith.constant 0 : index
    %c0_2 = arith.constant 0 : index
    %7 = vector.load %arg11[%6, %c0, %c0_2] : memref<18x18x16xbf16, #tpu.memory_space<vmem>>, vector<8x16x16xbf16>
    %c0_i32_3 = arith.constant 0 : i32
    %8 = arith.addi %4, %c0_i32_3 : i32
    %9 = arith.index_cast %8 : i32 to index
    %c1 = arith.constant 1 : index
    %c0_4 = arith.constant 0 : index
    %10 = vector.load %arg11[%9, %c1, %c0_4] : memref<18x18x16xbf16, #tpu.memory_space<vmem>>, vector<8x16x16xbf16>
    %c0_i32_5 = arith.constant 0 : i32
    %11 = arith.addi %4, %c0_i32_5 : i32
    %12 = arith.index_cast %11 : i32 to index
    %c2 = arith.constant 2 : index
    %c0_6 = arith.constant 0 : index
    %13 = vector.load %arg11[%12, %c2, %c0_6] : memref<18x18x16xbf16, #tpu.memory_space<vmem>>, vector<8x16x16xbf16>
    %c1_i32 = arith.constant 1 : i32
    %14 = arith.addi %4, %c1_i32 : i32
    %15 = arith.index_cast %14 : i32 to index
    %c0_7 = arith.constant 0 : index
    %c0_8 = arith.constant 0 : index
    %16 = vector.load %arg11[%15, %c0_7, %c0_8] : memref<18x18x16xbf16, #tpu.memory_space<vmem>>, vector<8x16x16xbf16>
    %c1_i32_9 = arith.constant 1 : i32
    %17 = arith.addi %4, %c1_i32_9 : i32
    %18 = arith.index_cast %17 : i32 to index
    %c1_10 = arith.constant 1 : index
    %c0_11 = arith.constant 0 : index
    %19 = vector.load %arg11[%18, %c1_10, %c0_11] : memref<18x18x16xbf16, #tpu.memory_space<vmem>>, vector<8x16x16xbf16>
    %c1_i32_12 = arith.constant 1 : i32
    %20 = arith.addi %4, %c1_i32_12 : i32
    %21 = arith.index_cast %20 : i32 to index
    %c2_13 = arith.constant 2 : index
    %c0_14 = arith.constant 0 : index
    %22 = vector.load %arg11[%21, %c2_13, %c0_14] : memref<18x18x16xbf16, #tpu.memory_space<vmem>>, vector<8x16x16xbf16>
    %c2_i32 = arith.constant 2 : i32
    %23 = arith.addi %4, %c2_i32 : i32
    %24 = arith.index_cast %23 : i32 to index
    %c0_15 = arith.constant 0 : index
    %c0_16 = arith.constant 0 : index
    %25 = vector.load %arg11[%24, %c0_15, %c0_16] : memref<18x18x16xbf16, #tpu.memory_space<vmem>>, vector<8x16x16xbf16>
    %c2_i32_17 = arith.constant 2 : i32
    %26 = arith.addi %4, %c2_i32_17 : i32
    %27 = arith.index_cast %26 : i32 to index
    %c1_18 = arith.constant 1 : index
    %c0_19 = arith.constant 0 : index
    %28 = vector.load %arg11[%27, %c1_18, %c0_19] : memref<18x18x16xbf16, #tpu.memory_space<vmem>>, vector<8x16x16xbf16>
    %c2_i32_20 = arith.constant 2 : i32
    %29 = arith.addi %4, %c2_i32_20 : i32
    %30 = arith.index_cast %29 : i32 to index
    %c2_21 = arith.constant 2 : index
    %c0_22 = arith.constant 0 : index
    %31 = vector.load %arg11[%30, %c2_21, %c0_22] : memref<18x18x16xbf16, #tpu.memory_space<vmem>>, vector<8x16x16xbf16>
    %32 = tpu.concatenate %7, %10, %13, %16, %19, %22, %25, %28, %31 in 2 : vector<8x16x16xbf16>, vector<8x16x16xbf16>, vector<8x16x16xbf16>, vector<8x16x16xbf16>, vector<8x16x16xbf16>, vector<8x16x16xbf16>, vector<8x16x16xbf16>, vector<8x16x16xbf16>, vector<8x16x16xbf16> -> vector<8x16x144xbf16>
    %33 = vector.shape_cast %32 : vector<8x16x144xbf16> to vector<128x144xbf16>
    %c0_23 = arith.constant 0 : index
    %c0_24 = arith.constant 0 : index
    %34 = vector.load %arg5[%c0_23, %c0_24] : memref<144x16xbf16, #tpu.memory_space<vmem>>, vector<144x16xbf16>
    %cst = arith.constant dense<0.000000e+00> : vector<128x16xf32>
    %35 = tpu.matmul %33, %34, %cst {dimension_numbers = #tpu.dot_dimension_numbers<[1], [0], [0], [1], [0, 0, 1, 1], [], []>} : vector<128x144xbf16>, vector<144x16xbf16>, vector<128x16xf32> -> vector<128x16xf32>
    %c0_25 = arith.constant 0 : index
    %c0_26 = arith.constant 0 : index
    %36 = vector.load %arg6[%c0_25, %c0_26] : memref<1x16xf32, #tpu.memory_space<vmem>>, vector<1x16xf32>
    %37 = vector.broadcast %36 : vector<1x16xf32> to vector<128x16xf32>
    %38 = arith.addf %35, %37 : vector<128x16xf32>
    %cst_27 = arith.constant 0.000000e+00 : f32
    %39 = vector.broadcast %cst_27 : f32 to vector<128x16xf32>
    %40 = arith.maximumf %38, %39 : vector<128x16xf32>
    %41 = arith.truncf %40 : vector<128x16xf32> to vector<128x16xbf16>
    %c128_i32 = arith.constant 128 : i32
    %42 = arith.muli %arg1, %c128_i32 : i32
    %43 = tpu.assume_multiple %42, 128 : i32
    %c0_28 = arith.constant 0 : index
    %44 = arith.index_cast %43 : i32 to index
    %c0_29 = arith.constant 0 : index
    %45 = vector.load %arg2[%c0_28, %44, %c0_29] : memref<1x256x8xbf16, #tpu.memory_space<vmem>>, vector<1x128x8xbf16>
    %46 = vector.shape_cast %45 : vector<1x128x8xbf16> to vector<128x8xbf16>
    %c0_30 = arith.constant 0 : index
    %c0_31 = arith.constant 0 : index
    %47 = vector.load %arg7[%c0_30, %c0_31] : memref<16x32xbf16, #tpu.memory_space<vmem>>, vector<16x32xbf16>
    %cst_32 = arith.constant dense<0.000000e+00> : vector<128x32xf32>
    %48 = tpu.matmul %41, %47, %cst_32 {dimension_numbers = #tpu.dot_dimension_numbers<[1], [0], [0], [1], [0, 0, 1, 1], [], []>} : vector<128x16xbf16>, vector<16x32xbf16>, vector<128x32xf32> -> vector<128x32xf32>
    %c0_33 = arith.constant 0 : index
    %c0_34 = arith.constant 0 : index
    %49 = vector.load %arg8[%c0_33, %c0_34] : memref<8x32xbf16, #tpu.memory_space<vmem>>, vector<8x32xbf16>
    %cst_35 = arith.constant dense<0.000000e+00> : vector<128x32xf32>
    %50 = tpu.matmul %46, %49, %cst_35 {dimension_numbers = #tpu.dot_dimension_numbers<[1], [0], [0], [1], [0, 0, 1, 1], [], []>} : vector<128x8xbf16>, vector<8x32xbf16>, vector<128x32xf32> -> vector<128x32xf32>
    %51 = arith.addf %48, %50 : vector<128x32xf32>
    %c0_36 = arith.constant 0 : index
    %c0_37 = arith.constant 0 : index
    %52 = vector.load %arg9[%c0_36, %c0_37] : memref<1x32xf32, #tpu.memory_space<vmem>>, vector<1x32xf32>
    %53 = vector.broadcast %52 : vector<1x32xf32> to vector<128x32xf32>
    %54 = arith.addf %51, %53 : vector<128x32xf32>
    %cst_38 = arith.constant 0.000000e+00 : f32
    %55 = vector.broadcast %cst_38 : f32 to vector<128x32xf32>
    %56 = arith.maximumf %54, %55 : vector<128x32xf32>
    %57 = arith.truncf %56 : vector<128x32xf32> to vector<128x32xbf16>
    %c0_39 = arith.constant 0 : index
    %c0_40 = arith.constant 0 : index
    %c0_41 = arith.constant 0 : index
    %58 = vector.load %arg10[%c0_39, %c0_40, %c0_41] : memref<1x128x32xbf16, #tpu.memory_space<vmem>>, vector<1x128x32xbf16>
    %59 = vector.shape_cast %58 : vector<1x128x32xbf16> to vector<128x32xbf16>
    %60 = vector.shape_cast %57 : vector<128x32xbf16> to vector<1x128x32xbf16>
    tpu.vector_store %arg10[%c0_39, %c0_40, %c0_41], %60 {strides = array<i32>} : memref<1x128x32xbf16, #tpu.memory_space<vmem>>, vector<1x128x32xbf16>,
    return
  }
  func.func @transform_0(%arg0: i32, %arg1: i32) -> (i32, i32, i32) {
    %c0_i32 = arith.constant 0 : i32
    %c0_i32_0 = arith.constant 0 : i32
    %c0_i32_1 = arith.constant 0 : i32
    return %arg0, %c0_i32, %c0_i32_0 : i32, i32, i32
  }
  func.func @transform_1(%arg0: i32, %arg1: i32) -> (i32, i32) {
    %c0_i32 = arith.constant 0 : i32
    %c0_i32_0 = arith.constant 0 : i32
    %c0_i32_1 = arith.constant 0 : i32
    return %c0_i32, %c0_i32_0 : i32, i32
  }
  func.func @transform_2(%arg0: i32, %arg1: i32) -> (i32, i32) {
    %c0_i32 = arith.constant 0 : i32
    %c0_i32_0 = arith.constant 0 : i32
    %c0_i32_1 = arith.constant 0 : i32
    return %c0_i32, %c0_i32_0 : i32, i32
  }
  func.func @transform_3(%arg0: i32, %arg1: i32) -> (i32, i32) {
    %c0_i32 = arith.constant 0 : i32
    %c0_i32_0 = arith.constant 0 : i32
    %c0_i32_1 = arith.constant 0 : i32
    return %c0_i32, %c0_i32_0 : i32, i32
  }
  func.func @transform_4(%arg0: i32, %arg1: i32) -> (i32, i32) {
    %c0_i32 = arith.constant 0 : i32
    %c0_i32_0 = arith.constant 0 : i32
    %c0_i32_1 = arith.constant 0 : i32
    return %c0_i32, %c0_i32_0 : i32, i32
  }
  func.func @transform_5(%arg0: i32, %arg1: i32) -> (i32, i32) {
    %c0_i32 = arith.constant 0 : i32
    %c0_i32_0 = arith.constant 0 : i32
    %c0_i32_1 = arith.constant 0 : i32
    return %c0_i32, %c0_i32_0 : i32, i32
  }
  func.func @transform_6(%arg0: i32, %arg1: i32) -> (i32, i32) {
    %c0_i32 = arith.constant 0 : i32
    %c0_i32_0 = arith.constant 0 : i32
    %c0_i32_1 = arith.constant 0 : i32
    return %c0_i32, %c0_i32_0 : i32, i32
  }
  func.func @transform_7(%arg0: i32, %arg1: i32) -> (i32, i32) {
    %c0_i32 = arith.constant 0 : i32
    %c0_i32_0 = arith.constant 0 : i32
    %c0_i32_1 = arith.constant 0 : i32
    return %c0_i32, %c0_i32_0 : i32, i32
  }
  func.func @transform_8(%arg0: i32, %arg1: i32) -> (i32, i32, i32) {
    %c0_i32 = arith.constant 0 : i32
    %c0_i32_0 = arith.constant 0 : i32
    return %arg0, %arg1, %c0_i32 : i32, i32, i32
  }
}

</mosaic_0001>

<llo_original>
// kernel: block_forward.1
$region0: #{block_forward.1}
  #allocation0 [shape = 'u32[]', space=smem, size = 0x4, offset = 0x4, fixed_abs, tag = 'smem constant byte address 0x4 - core index']
  #allocation1 [shape = 'u32[144,128]{1,0:T(1,128)}', space=vmem, size = 0x12000, scoped, tag = 'internal scratch']
  #allocation2 [shape = 'bf16[18,18,16]{2,1,0:T(8,128)(2,1)}', space=vmem, size = 0x1b000, scoped, tag = 'scratch operand']
  %s0 = inlined_call_operand.vmem [shape: bf16[2,256,8], index: 0, kind: input, shape index: {}]
  %s1 = inlined_call_operand.vmem [shape: bf16[8,16], index: 1, kind: input, shape index: {}]
  %s2 = inlined_call_operand.vmem [shape: f32[1,16], index: 2, kind: input, shape index: {}]
  %s3 = inlined_call_operand.vmem [shape: bf16[144,16], index: 3, kind: input, shape index: {}]
  %s4 = inlined_call_operand.vmem [shape: f32[1,16], index: 4, kind: input, shape index: {}]
  %s5 = inlined_call_operand.vmem [shape: bf16[16,32], index: 5, kind: input, shape index: {}]
  %s6 = inlined_call_operand.vmem [shape: bf16[8,32], index: 6, kind: input, shape index: {}]
  %s7 = inlined_call_operand.vmem [shape: f32[1,32], index: 7, kind: input, shape index: {}]
  %s8 = inlined_call_operand.vmem [shape: bf16[2,256,32], index: 8, kind: output, shape index: {}]
  %s9 = sld [smem:[#allocation0]]
  $region69: #{block_forward.1} parent=0
    _
  %s11 = ssub.s32 1, %s9
  %s12 = scalar_select 0, %s11, %s9
  loop: start=0, step=1, limit=6
  $region2: #{block_forward.1} parent=0 // loop_pre_header
    _
  $region3: #{block_forward.1} parent=0 // loop_header
    %s14 = sphi 0, %s18
    %p15 = scmp.ge.s32.totalorder %s14, 6
    %s21 = sphi 0, %s33
    %s22 = sphi 0, %s29
    %s23 = sphi 0, %s21
    %s24 = sphi 0, %s22
    %s25 = sphi 0, %s23
    %s26 = sphi 0, %s24
    %s36 = sphi 0, %s38
    %s39 = sphi 0, %s36
    %s40 = sphi 0, %s39
    %s56 = sphi 0, %s40
    %s60 = sphi 0, %s60
    %s62 = sphi 0, %s60
    %s63 = sphi 0, %s62
    %s77 = sphi 0, %s63
    %s81 = sphi 0, %s81
    %s83 = sphi 0, %s81
    %s84 = sphi 0, %s83
    %s98 = sphi 0, %s84
    %s102 = sphi 0, %s102
    %s104 = sphi 0, %s102
    %s105 = sphi 0, %s104
    %s119 = sphi 0, %s105
    %s123 = sphi 0, %s123
    %s125 = sphi 0, %s123
    %s126 = sphi 0, %s125
    %s140 = sphi 0, %s126
    %s144 = sphi 0, %s144
    %s146 = sphi 0, %s144
    %s147 = sphi 0, %s146
    %s161 = sphi 0, %s147
    %s165 = sphi 0, %s165
    %s167 = sphi 0, %s165
    %s168 = sphi 0, %s167
    %s182 = sphi 0, %s168
    %s186 = sphi 0, %s186
    %s188 = sphi 0, %s186
    %s189 = sphi 0, %s188
    %s203 = sphi 0, %s189
    %s211 = sphi 0, %s213
    %s214 = sphi 0, %s211
    %s215 = sphi 0, %s214
    %s231 = sphi 0, %s215
  $region4: #{block_forward.1} parent=0 // loop_header_branch
    %17 = sbr.rel (%p15) target = $region8
  $region5: #{block_forward.1} parent=0 // loop_body
    %s19 = ssub.s32 %s14, 1
    %s20 = ssub.s32 %s14, 2
    %s27 = sadd.s32 1, %s22
    %p28 = scmp.ge.s32.totalorder %s27, 2
    %s29 = scalar_select %p28, 0, %s27
    %s30 = sadd.s32 1, %s21
    %s31 = scalar_select %p28, %s30, %s21
    %p32 = scmp.ge.s32.totalorder %s31, 2
    %s33 = scalar_select %p32, 0, %s31
    %s34 = ssub.s32 %s21, %s33
    %p35 = scmp.eq.s32.totalorder %s34, 0
    %s37 = sadd.s32 %s36, 1
    %s38 = scalar_select %p35, %s36, %s37
    %p41 = pneg %p35
    %p42 = scmp.eq.s32.totalorder %s14, 3
    %p43 = por %p41, %p42
    %p44 = scmp.ne.s32.totalorder %s36, %s39
    %p45 = scmp.eq.s32.totalorder %s14, 0
    %p46 = por %p44, %p45
    %p47 = scmp.ne.s32.totalorder %s36, %s39
    %p48 = scmp.eq.s32.totalorder %s19, 3
    %p49 = por %p47, %p48
    %p50 = scmp.ne.s32.totalorder %s39, %s40
    %p51 = scmp.eq.s32.totalorder %s19, 0
    %p52 = por %p50, %p51
    %p53 = scmp.ne.s32.totalorder %s39, %s40
    %p54 = scmp.eq.s32.totalorder %s20, 3
    %p55 = por %p53, %p54
    %p57 = scmp.ne.s32.totalorder %s40, %s56
    %p58 = scmp.eq.s32.totalorder %s20, 0
    %p59 = por %p57, %p58
    %s61 = sadd.s32 %s60, 1
    %p64 = scmp.eq.s32.totalorder %s14, 3
    %p65 = scmp.ne.s32.totalorder %s60, %s62
    %p66 = scmp.eq.s32.totalorder %s14, 0
    %p67 = por %p65, %p66
    %p68 = scmp.ne.s32.totalorder %s60, %s62
    %p69 = scmp.eq.s32.totalorder %s19, 3
    %p70 = por %p68, %p69
    %p71 = scmp.ne.s32.totalorder %s62, %s63
    %p72 = scmp.eq.s32.totalorder %s19, 0
    %p73 = por %p71, %p72
    %p74 = scmp.ne.s32.totalorder %s62, %s63
    %p75 = scmp.eq.s32.totalorder %s20, 3
    %p76 = por %p74, %p75
    %p78 = scmp.ne.s32.totalorder %s63, %s77
    %p79 = scmp.eq.s32.totalorder %s20, 0
    %p80 = por %p78, %p79
    %s82 = sadd.s32 %s81, 1
    %p85 = scmp.eq.s32.totalorder %s14, 3
    %p86 = scmp.ne.s32.totalorder %s81, %s83
    %p87 = scmp.eq.s32.totalorder %s14, 0
    %p88 = por %p86, %p87
    %p89 = scmp.ne.s32.totalorder %s81, %s83
    %p90 = scmp.eq.s32.totalorder %s19, 3
    %p91 = por %p89, %p90
    %p92 = scmp.ne.s32.totalorder %s83, %s84
    %p93 = scmp.eq.s32.totalorder %s19, 0
    %p94 = por %p92, %p93
    %p95 = scmp.ne.s32.totalorder %s83, %s84
    %p96 = scmp.eq.s32.totalorder %s20, 3
    %p97 = por %p95, %p96
    %p99 = scmp.ne.s32.totalorder %s84, %s98
    %p100 = scmp.eq.s32.totalorder %s20, 0
    %p101 = por %p99, %p100
    %s103 = sadd.s32 %s102, 1
    %p106 = scmp.eq.s32.totalorder %s14, 3
    %p107 = scmp.ne.s32.totalorder %s102, %s104
    %p108 = scmp.eq.s32.totalorder %s14, 0
    %p109 = por %p107, %p108
    %p110 = scmp.ne.s32.totalorder %s102, %s104
    %p111 = scmp.eq.s32.totalorder %s19, 3
    %p112 = por %p110, %p111
    %p113 = scmp.ne.s32.totalorder %s104, %s105
    %p114 = scmp.eq.s32.totalorder %s19, 0
    %p115 = por %p113, %p114
    %p116 = scmp.ne.s32.totalorder %s104, %s105
    %p117 = scmp.eq.s32.totalorder %s20, 3
    %p118 = por %p116, %p117
    %p120 = scmp.ne.s32.totalorder %s105, %s119
    %p121 = scmp.eq.s32.totalorder %s20, 0
    %p122 = por %p120, %p121
    %s124 = sadd.s32 %s123, 1
    %p127 = scmp.eq.s32.totalorder %s14, 3
    %p128 = scmp.ne.s32.totalorder %s123, %s125
    %p129 = scmp.eq.s32.totalorder %s14, 0
    %p130 = por %p128, %p129
    %p131 = scmp.ne.s32.totalorder %s123, %s125
    %p132 = scmp.eq.s32.totalorder %s19, 3
    %p133 = por %p131, %p132
    %p134 = scmp.ne.s32.totalorder %s125, %s126
    %p135 = scmp.eq.s32.totalorder %s19, 0
    %p136 = por %p134, %p135
    %p137 = scmp.ne.s32.totalorder %s125, %s126
    %p138 = scmp.eq.s32.totalorder %s20, 3
    %p139 = por %p137, %p138
    %p141 = scmp.ne.s32.totalorder %s126, %s140
    %p142 = scmp.eq.s32.totalorder %s20, 0
    %p143 = por %p141, %p142
    %s145 = sadd.s32 %s144, 1
    %p148 = scmp.eq.s32.totalorder %s14, 3
    %p149 = scmp.ne.s32.totalorder %s144, %s146
    %p150 = scmp.eq.s32.totalorder %s14, 0
    %p151 = por %p149, %p150
    %p152 = scmp.ne.s32.totalorder %s144, %s146
    %p153 = scmp.eq.s32.totalorder %s19, 3
    %p154 = por %p152, %p153
    %p155 = scmp.ne.s32.totalorder %s146, %s147
    %p156 = scmp.eq.s32.totalorder %s19, 0
    %p157 = por %p155, %p156
    %p158 = scmp.ne.s32.totalorder %s146, %s147
    %p159 = scmp.eq.s32.totalorder %s20, 3
    %p160 = por %p158, %p159
    %p162 = scmp.ne.s32.totalorder %s147, %s161
    %p163 = scmp.eq.s32.totalorder %s20, 0
    %p164 = por %p162, %p163
    %s166 = sadd.s32 %s165, 1
    %p169 = scmp.eq.s32.totalorder %s14, 3
    %p170 = scmp.ne.s32.totalorder %s165, %s167
    %p171 = scmp.eq.s32.totalorder %s14, 0
    %p172 = por %p170, %p171
    %p173 = scmp.ne.s32.totalorder %s165, %s167
    %p174 = scmp.eq.s32.totalorder %s19, 3
    %p175 = por %p173, %p174
    %p176 = scmp.ne.s32.totalorder %s167, %s168
    %p177 = scmp.eq.s32.totalorder %s19, 0
    %p178 = por %p176, %p177
    %p179 = scmp.ne.s32.totalorder %s167, %s168
    %p180 = scmp.eq.s32.totalorder %s20, 3
    %p181 = por %p179, %p180
    %p183 = scmp.ne.s32.totalorder %s168, %s182
    %p184 = scmp.eq.s32.totalorder %s20, 0
    %p185 = por %p183, %p184
    %s187 = sadd.s32 %s186, 1
    %p190 = scmp.eq.s32.totalorder %s14, 3
    %p191 = scmp.ne.s32.totalorder %s186, %s188
    %p192 = scmp.eq.s32.totalorder %s14, 0
    %p193 = por %p191, %p192
    %p194 = scmp.ne.s32.totalorder %s186, %s188
    %p195 = scmp.eq.s32.totalorder %s19, 3
    %p196 = por %p194, %p195
    %p197 = scmp.ne.s32.totalorder %s188, %s189
    %p198 = scmp.eq.s32.totalorder %s19, 0
    %p199 = por %p197, %p198
    %p200 = scmp.ne.s32.totalorder %s188, %s189
    %p201 = scmp.eq.s32.totalorder %s20, 3
    %p202 = por %p200, %p201
    %p204 = scmp.ne.s32.totalorder %s189, %s203
    %p205 = scmp.eq.s32.totalorder %s20, 0
    %p206 = por %p204, %p205
    %s207 = ssub.s32 %s21, %s33
    %s208 = ssub.s32 %s22, %s29
    %s209 = sor.u32 %s207, %s208
    %p210 = scmp.eq.s32.totalorder %s209, 0
    %s212 = sadd.s32 %s211, 1
    %s213 = scalar_select %p210, %s211, %s212
    %p216 = pneg %p210
    %p217 = scmp.eq.s32.totalorder %s14, 3
    %p218 = por %p216, %p217
    %p219 = scmp.ne.s32.totalorder %s211, %s214
    %p220 = scmp.eq.s32.totalorder %s14, 0
    %p221 = por %p219, %p220
    %p222 = scmp.ne.s32.totalorder %s211, %s214
    %p223 = scmp.eq.s32.totalorder %s19, 3
    %p224 = por %p222, %p223
    %p225 = scmp.ne.s32.totalorder %s214, %s215
    %p226 = scmp.eq.s32.totalorder %s19, 0
    %p227 = por %p225, %p226
    %p228 = scmp.ne.s32.totalorder %s214, %s215
    %p229 = scmp.eq.s32.totalorder %s20, 3
    %p230 = por %p228, %p229
    %p232 = scmp.ne.s32.totalorder %s215, %s231
    %p233 = scmp.eq.s32.totalorder %s20, 0
    %p234 = por %p232, %p233
    %p235 = scmp.le.s32.totalorder 1, %s14
    %p236 = scmp.lt.s32.totalorder %s14, 5
    %p237 = pnand %p235, %p236
    %p238 = pneg %p237
    // Predicated region
    $region9: #{block_forward.1} parent=5 // pred_check
      _
    $region10: #{block_forward.1} parent=5 // pred_check_branch
      %240 = sbr.rel (%p237) target = $region12
    $region11: #{block_forward.1} parent=5 // pred_region
      %s241 = ssub.s32 %s14, 1
      // Predicated region
      $region13: #{block_forward.1} parent=11 // pred_check
        %p242 = pneg %p73
      $region14: #{block_forward.1} parent=11 // pred_check_branch
        %244 = sbr.rel (%p242) target = $region16
      $region15: #{block_forward.1} parent=11 // pred_region
        _
      $region16: #{block_forward.1} parent=11 // pred_fallthru
        _
      // Predicated region
      $region17: #{block_forward.1} parent=11 // pred_check
        %p245 = pneg %p94
      $region18: #{block_forward.1} parent=11 // pred_check_branch
        %247 = sbr.rel (%p245) target = $region20
      $region19: #{block_forward.1} parent=11 // pred_region
        _
      $region20: #{block_forward.1} parent=11 // pred_fallthru
        _
      // Predicated region
      $region21: #{block_forward.1} parent=11 // pred_check
        %p248 = pneg %p115
      $region22: #{block_forward.1} parent=11 // pred_check_branch
        %250 = sbr.rel (%p248) target = $region24
      $region23: #{block_forward.1} parent=11 // pred_region
        _
      $region24: #{block_forward.1} parent=11 // pred_fallthru
        _
      // Predicated region
      $region25: #{block_forward.1} parent=11 // pred_check
        %p251 = pneg %p136
      $region26: #{block_forward.1} parent=11 // pred_check_branch
        %253 = sbr.rel (%p251) target = $region28
      $region27: #{block_forward.1} parent=11 // pred_region
        _
      $region28: #{block_forward.1} parent=11 // pred_fallthru
        _
      // Predicated region
      $region29: #{block_forward.1} parent=11 // pred_check
        %p254 = pneg %p157
      $region30: #{block_forward.1} parent=11 // pred_check_branch
        %256 = sbr.rel (%p254) target = $region32
      $region31: #{block_forward.1} parent=11 // pred_region
        _
      $region32: #{block_forward.1} parent=11 // pred_fallthru
        _
      // Predicated region
      $region33: #{block_forward.1} parent=11 // pred_check
        %p257 = pneg %p178
      $region34: #{block_forward.1} parent=11 // pred_check_branch
        %259 = sbr.rel (%p257) target = $region36
      $region35: #{block_forward.1} parent=11 // pred_region
        _
      $region36: #{block_forward.1} parent=11 // pred_fallthru
        _
      // Predicated region
      $region37: #{block_forward.1} parent=11 // pred_check
        %p260 = pneg %p199
      $region38: #{block_forward.1} parent=11 // pred_check_branch
        %262 = sbr.rel (%p260) target = $region40
      $region39: #{block_forward.1} parent=11 // pred_region
        _
      $region40: #{block_forward.1} parent=11 // pred_fallthru
        _
    $region12: #{block_forward.1} parent=5 // pred_fallthru
      _
    %p263 = scmp.lt.s32.totalorder %s14, 4
    // Predicated region
    $region41: #{block_forward.1} parent=5 // pred_check
      %p264 = pneg %p263
    $region42: #{block_forward.1} parent=5 // pred_check_branch
      %266 = sbr.rel (%p264) target = $region44
    $region43: #{block_forward.1} parent=5 // pred_region
      // Predicated region
      $region45: #{block_forward.1} parent=43 // pred_check
        %p267 = pneg %p46
      $region46: #{block_forward.1} parent=43 // pred_check_branch
        %269 = sbr.rel (%p267) target = $region48
      $region47: #{block_forward.1} parent=43 // pred_region
        %p270 = scmp.lt.s32.totalorder %s21, 1
        %s271 = scalar_select %p270, %s21, 1
        %s272 = smul.addr %s271, 32
        %s273 = smul.addr %s272, 4
        %s274 = scalar_lea.vmem %s0, %s273
      $region48: #{block_forward.1} parent=43 // pred_fallthru
        _
    $region44: #{block_forward.1} parent=5 // pred_fallthru
      _
    %p275 = scmp.le.s32.totalorder 1, %s14
    %p276 = scmp.lt.s32.totalorder %s14, 5
    %p277 = pnand %p275, %p276
    %p278 = pneg %p277
    // Predicated region
    $region49: #{block_forward.1} parent=5 // pred_check
      _
    $region50: #{block_forward.1} parent=5 // pred_check_branch
      %280 = sbr.rel (%p277) target = $region52
    $region51: #{block_forward.1} parent=5 // pred_region
      %s281 = ssub.s32 %s14, 1
      %p282 = scmp.lt.s32.totalorder %s23, 1
      %s283 = scalar_select %p282, %s23, 1
      %s284 = smul.addr %s283, 32
      %s285 = smul.addr %s284, 4
      %s286 = scalar_lea.vmem %s0, %s285
      %p287 = pneg %p52
      %p288 = pneg %p49
      %p289 = pneg %p73
      %p290 = pneg %p70
      %p291 = pneg %p94
      %p292 = pneg %p91
      %p293 = pneg %p115
      %p294 = pneg %p112
      %p295 = pneg %p136
      %p296 = pneg %p133
      %p297 = pneg %p157
      %p298 = pneg %p154
      %p299 = pneg %p178
      %p300 = pneg %p175
      %p301 = pneg %p199
      %p302 = pneg %p196
      %p303 = pneg %p227
      %p304 = pneg %p224
      %s305 = smul.u32 16, %s24
      %p306 = scmp.lt.s32.totalorder %s23, 1
      %s307 = scalar_select %p306, %s23, 1
      %p308 = scmp.lt.s32.totalorder %s305, 31
      %s309 = scalar_select %p308, %s305, 31
      %s310 = smul.addr %s307, 32
      %s311 = sadd.s32 %s309, %s310
      %s312 = smul.addr %s311, 4
      %s313 = scalar_lea.vmem %s8, %s312
      %p314 = scmp.lt.s32.totalorder %s23, 1
      %s315 = scalar_select %p314, %s23, 1
      %s316 = smul.addr %s315, 32
      %s317 = smul.addr %s316, 4
      %s318 = scalar_lea.vmem %s0, %s317
      %s319 = smul.u32 16, %s24
      %p320 = scmp.lt.s32.totalorder %s23, 1
      %s321 = scalar_select %p320, %s23, 1
      %p322 = scmp.lt.s32.totalorder %s319, 31
      %s323 = scalar_select %p322, %s319, 31
      %s324 = smul.addr %s321, 32
      %s325 = sadd.s32 %s323, %s324
      %s326 = smul.addr %s325, 4
      %s327 = scalar_lea.vmem %s8, %s326
      %s328 = smul.u32 16, %s24
      %p330 = scmp.eq.s32.totalorder %s24, 0
      // Predicated region
      $region53: #{block_forward.1} parent=51 // pred_check
        %p331 = pneg %p330
      $region54: #{block_forward.1} parent=51 // pred_check_branch
        %333 = sbr.rel (%p331) target = $region56
      $region55: #{block_forward.1} parent=51 // pred_region
        %v334 = vld [vmem:[%s318] sm:$0xf]
        %v335 = vld [vmem:[%s318 + $0x4] sm:$0xf]
        %v336 = vld [vmem:[%s318 + $0x8] sm:$0xf]
        %v337 = vld [vmem:[%s318 + $0xc] sm:$0xf]
        %v338 = vld [vmem:[%s318 + $0x10] sm:$0xf]
        %v339 = vld [vmem:[%s318 + $0x14] sm:$0xf]
        %v340 = vld [vmem:[%s318 + $0x18] sm:$0xf]
        %v341 = vld [vmem:[%s318 + $0x1c] sm:$0xf]
        %v342 = vld [vmem:[%s318 + $0x20] sm:$0xf]
        %v343 = vld [vmem:[%s318 + $0x24] sm:$0xf]
        %v344 = vld [vmem:[%s318 + $0x28] sm:$0xf]
        %v345 = vld [vmem:[%s318 + $0x2c] sm:$0xf]
        %v346 = vld [vmem:[%s318 + $0x30] sm:$0xf]
        %v347 = vld [vmem:[%s318 + $0x34] sm:$0xf]
        %v348 = vld [vmem:[%s318 + $0x38] sm:$0xf]
        %v349 = vld [vmem:[%s318 + $0x3c] sm:$0xf]
        %v350 = vld [vmem:[%s318 + $0x40] sm:$0xf]
        %v351 = vld [vmem:[%s318 + $0x44] sm:$0xf]
        %v352 = vld [vmem:[%s318 + $0x48] sm:$0xf]
        %v353 = vld [vmem:[%s318 + $0x4c] sm:$0xf]
        %v354 = vld [vmem:[%s318 + $0x50] sm:$0xf]
        %v355 = vld [vmem:[%s318 + $0x54] sm:$0xf]
        %v356 = vld [vmem:[%s318 + $0x58] sm:$0xf]
        %v357 = vld [vmem:[%s318 + $0x5c] sm:$0xf]
        %v358 = vld [vmem:[%s318 + $0x60] sm:$0xf]
        %v359 = vld [vmem:[%s318 + $0x64] sm:$0xf]
        %v360 = vld [vmem:[%s318 + $0x68] sm:$0xf]
        %v361 = vld [vmem:[%s318 + $0x6c] sm:$0xf]
        %v362 = vld [vmem:[%s318 + $0x70] sm:$0xf]
        %v363 = vld [vmem:[%s318 + $0x74] sm:$0xf]
        %v364 = vld [vmem:[%s318 + $0x78] sm:$0xf]
        %v365 = vld [vmem:[%s318 + $0x7c] sm:$0xf]
        %v366 = vld [vmem:[%s1] sm:$0xf]
        %v367 = vld [vmem:[%s2] sm:$0x1]
        %v369 = vlaneseq
        %v370 = vshrl.u32 %v369, 7
        %v371 = vsub.s32 0, %v370
        %v372 = vrot.slane %v367, %v371
        %v406 = vunpack.c.l.b16 %v334
        %v407 = vunpack.c.l.b16 %v335
        %v408 = vunpack.c.l.b16 %v336
        %v409 = vunpack.c.l.b16 %v337
        %v410 = vunpack.c.l.b16 %v338
        %v411 = vunpack.c.l.b16 %v339
        %v412 = vunpack.c.l.b16 %v340
        %v413 = vunpack.c.l.b16 %v341
        %v414 = vunpack.c.l.b16 %v342
        %v415 = vunpack.c.l.b16 %v343
        %v416 = vunpack.c.l.b16 %v344
        %v417 = vunpack.c.l.b16 %v345
        %v418 = vunpack.c.l.b16 %v346
        %v419 = vunpack.c.l.b16 %v347
        %v420 = vunpack.c.l.b16 %v348
        %v421 = vunpack.c.l.b16 %v349
        %v422 = vunpack.c.l.b16 %v350
        %v423 = vunpack.c.l.b16 %v351
        %v424 = vunpack.c.l.b16 %v352
        %v425 = vunpack.c.l.b16 %v353
        %v426 = vunpack.c.l.b16 %v354
        %v427 = vunpack.c.l.b16 %v355
        %v428 = vunpack.c.l.b16 %v356
        %v429 = vunpack.c.l.b16 %v357
        %v430 = vunpack.c.l.b16 %v358
        %v431 = vunpack.c.l.b16 %v359
        %v432 = vunpack.c.l.b16 %v360
        %v433 = vunpack.c.l.b16 %v361
        %v434 = vunpack.c.l.b16 %v362
        %v435 = vunpack.c.l.b16 %v363
        %v436 = vunpack.c.l.b16 %v364
        %v437 = vunpack.c.l.b16 %v365
        %v438 = vpack.c.b16 %v407, %v406
        %v439 = vpack.c.b16 %v409, %v408
        %v440 = vpack.c.b16 %v411, %v410
        %v441 = vpack.c.b16 %v413, %v412
        %v442 = vpack.c.b16 %v415, %v414
        %v443 = vpack.c.b16 %v417, %v416
        %v444 = vpack.c.b16 %v419, %v418
        %v445 = vpack.c.b16 %v421, %v420
        %v446 = vpack.c.b16 %v423, %v422
        %v447 = vpack.c.b16 %v425, %v424
        %v448 = vpack.c.b16 %v427, %v426
        %v449 = vpack.c.b16 %v429, %v428
        %v450 = vpack.c.b16 %v431, %v430
        %v451 = vpack.c.b16 %v433, %v432
        %v452 = vpack.c.b16 %v435, %v434
        %v453 = vpack.c.b16 %v437, %v436
        %vm454 = vcmask 64512
        %v456 = vsel %vm454, %v438, 0
        %v459 = vsel %vm454, %v439, 0
        %v462 = vsel %vm454, %v440, 0
        %v465 = vsel %vm454, %v441, 0
        %v468 = vsel %vm454, %v442, 0
        %v471 = vsel %vm454, %v443, 0
        %v474 = vsel %vm454, %v444, 0
        %v477 = vsel %vm454, %v445, 0
        %v480 = vsel %vm454, %v446, 0
        %v483 = vsel %vm454, %v447, 0
        %v486 = vsel %vm454, %v448, 0
        %v489 = vsel %vm454, %v449, 0
        %v492 = vsel %vm454, %v450, 0
        %v495 = vsel %vm454, %v451, 0
        %v498 = vsel %vm454, %v452, 0
        %v501 = vsel %vm454, %v453, 0
        %vm503 = vcmask 1043456
        %v505 = vsel %vm503, %v366, 0
        %507 = vmatprep.subr.bf16.mxu0 0
        %508 = vmatpush1.bf16.msra.mxu0 %v505
        %509 = vmatprep.subr.bf16.mxu0 0
        %510 = vmatpush1.bf16.msra.mxu0 0
        %511 = vmatprep.subr.bf16.mxu0 0
        %512 = vmatpush1.bf16.msra.mxu0 0
        %513 = vmatprep.subr.bf16.mxu0 0
        %514 = vmatpush1.bf16.msra.mxu0 0
        %515 = vmatprep.subr.bf16.mxu0 0
        %516 = vmatpush1.bf16.msra.mxu0 0
        %517 = vmatprep.subr.bf16.mxu0 0
        %518 = vmatpush1.bf16.msra.mxu0 0
        %519 = vmatprep.subr.bf16.mxu0 0
        %520 = vmatpush1.bf16.msra.mxu0 0
        %521 = vmatprep.subr.bf16.mxu0 0
        %522 = vmatpush1.bf16.msra.mxu0 0
        %523 = vmatprep.subr.bf16.mxu0 0
        %524 = vmatpush1.bf16.msra.mxu0 0
        %525 = vmatprep.subr.bf16.mxu0 0
        %526 = vmatpush1.bf16.msra.mxu0 0
        %527 = vmatprep.subr.bf16.mxu0 0
        %528 = vmatpush1.bf16.msra.mxu0 0
        %529 = vmatprep.subr.bf16.mxu0 0
        %530 = vmatpush1.bf16.msra.mxu0 0
        %531 = vmatprep.subr.bf16.mxu0 0
        %532 = vmatpush1.bf16.msra.mxu0 0
        %533 = vmatprep.subr.bf16.mxu0 0
        %534 = vmatpush1.bf16.msra.mxu0 0
        %535 = vmatprep.subr.bf16.mxu0 0
        %536 = vmatpush1.bf16.msra.mxu0 0
        %537 = vmatprep.subr.bf16.mxu0 0
        %538 = vmatpush1.bf16.msra.mxu0 0
        %539 = vmatprep.mubr.bf16.mxu0 0
        %540 = vmatmul.mubr.bf16.gmra.mrb[0].mxu0 %v456
        %v541 = vpop.f32.mrb[0].mxu0
        %v542 = vadd.f32 %v372, %v541
        %v543 = vpop.f32.mrb[0].mxu0
        %v544 = vpop.f32.mrb[0].mxu0
        %v545 = vadd.f32 %v372, %v544
        %v546 = vpop.f32.mrb[0].mxu0
        %547 = vmatprep.mubr.bf16.mxu0 0
        %548 = vmatmul.mubr.bf16.gmra.mrb[0].mxu0 %v459
        %v549 = vpop.f32.mrb[0].mxu0
        %v550 = vadd.f32 %v372, %v549
        %v551 = vpop.f32.mrb[0].mxu0
        %v552 = vpop.f32.mrb[0].mxu0
        %v553 = vadd.f32 %v372, %v552
        %v554 = vpop.f32.mrb[0].mxu0
        %555 = vmatprep.mubr.bf16.mxu0 0
        %556 = vmatmul.mubr.bf16.gmra.mrb[0].mxu0 %v462
        %v557 = vpop.f32.mrb[0].mxu0
        %v558 = vadd.f32 %v372, %v557
        %v559 = vpop.f32.mrb[0].mxu0
        %v560 = vpop.f32.mrb[0].mxu0
        %v561 = vadd.f32 %v372, %v560
        %v562 = vpop.f32.mrb[0].mxu0
        %563 = vmatprep.mubr.bf16.mxu0 0
        %564 = vmatmul.mubr.bf16.gmra.mrb[0].mxu0 %v465
        %v565 = vpop.f32.mrb[0].mxu0
        %v566 = vadd.f32 %v372, %v565
        %v567 = vpop.f32.mrb[0].mxu0
        %v568 = vpop.f32.mrb[0].mxu0
        %v569 = vadd.f32 %v372, %v568
        %v570 = vpop.f32.mrb[0].mxu0
        %571 = vmatprep.mubr.bf16.mxu0 0
        %572 = vmatmul.mubr.bf16.gmra.mrb[0].mxu0 %v468
        %v573 = vpop.f32.mrb[0].mxu0
        %v574 = vadd.f32 %v372, %v573
        %v575 = vpop.f32.mrb[0].mxu0
        %v576 = vpop.f32.mrb[0].mxu0
        %v577 = vadd.f32 %v372, %v576
        %v578 = vpop.f32.mrb[0].mxu0
        %579 = vmatprep.mubr.bf16.mxu0 0
        %580 = vmatmul.mubr.bf16.gmra.mrb[0].mxu0 %v471
        %v581 = vpop.f32.mrb[0].mxu0
        %v582 = vadd.f32 %v372, %v581
        %v583 = vpop.f32.mrb[0].mxu0
        %v584 = vpop.f32.mrb[0].mxu0
        %v585 = vadd.f32 %v372, %v584
        %v586 = vpop.f32.mrb[0].mxu0
        %587 = vmatprep.mubr.bf16.mxu0 0
        %588 = vmatmul.mubr.bf16.gmra.mrb[0].mxu0 %v474
        %v589 = vpop.f32.mrb[0].mxu0
        %v590 = vadd.f32 %v372, %v589
        %v591 = vpop.f32.mrb[0].mxu0
        %v592 = vpop.f32.mrb[0].mxu0
        %v593 = vadd.f32 %v372, %v592
        %v594 = vpop.f32.mrb[0].mxu0
        %595 = vmatprep.mubr.bf16.mxu0 0
        %596 = vmatmul.mubr.bf16.gmra.mrb[0].mxu0 %v477
        %v597 = vpop.f32.mrb[0].mxu0
        %v598 = vadd.f32 %v372, %v597
        %v599 = vpop.f32.mrb[0].mxu0
        %v600 = vpop.f32.mrb[0].mxu0
        %v601 = vadd.f32 %v372, %v600
        %v602 = vpop.f32.mrb[0].mxu0
        %603 = vmatprep.mubr.bf16.mxu0 0
        %604 = vmatmul.mubr.bf16.gmra.mrb[0].mxu0 %v480
        %v605 = vpop.f32.mrb[0].mxu0
        %v606 = vadd.f32 %v372, %v605
        %v607 = vpop.f32.mrb[0].mxu0
        %v608 = vpop.f32.mrb[0].mxu0
        %v609 = vadd.f32 %v372, %v608
        %v610 = vpop.f32.mrb[0].mxu0
        %611 = vmatprep.mubr.bf16.mxu0 0
        %612 = vmatmul.mubr.bf16.gmra.mrb[0].mxu0 %v483
        %v613 = vpop.f32.mrb[0].mxu0
        %v614 = vadd.f32 %v372, %v613
        %v615 = vpop.f32.mrb[0].mxu0
        %v616 = vpop.f32.mrb[0].mxu0
        %v617 = vadd.f32 %v372, %v616
        %v618 = vpop.f32.mrb[0].mxu0
        %619 = vmatprep.mubr.bf16.mxu0 0
        %620 = vmatmul.mubr.bf16.gmra.mrb[0].mxu0 %v486
        %v621 = vpop.f32.mrb[0].mxu0
        %v622 = vadd.f32 %v372, %v621
        %v623 = vpop.f32.mrb[0].mxu0
        %v624 = vpop.f32.mrb[0].mxu0
        %v625 = vadd.f32 %v372, %v624
        %v626 = vpop.f32.mrb[0].mxu0
        %627 = vmatprep.mubr.bf16.mxu0 0
        %628 = vmatmul.mubr.bf16.gmra.mrb[0].mxu0 %v489
        %v629 = vpop.f32.mrb[0].mxu0
        %v630 = vadd.f32 %v372, %v629
        %v631 = vpop.f32.mrb[0].mxu0
        %v632 = vpop.f32.mrb[0].mxu0
        %v633 = vadd.f32 %v372, %v632
        %v634 = vpop.f32.mrb[0].mxu0
        %635 = vmatprep.mubr.bf16.mxu0 0
        %636 = vmatmul.mubr.bf16.gmra.mrb[0].mxu0 %v492
        %v637 = vpop.f32.mrb[0].mxu0
        %v638 = vadd.f32 %v372, %v637
        %v639 = vpop.f32.mrb[0].mxu0
        %v640 = vpop.f32.mrb[0].mxu0
        %v641 = vadd.f32 %v372, %v640
        %v642 = vpop.f32.mrb[0].mxu0
        %643 = vmatprep.mubr.bf16.mxu0 0
        %644 = vmatmul.mubr.bf16.gmra.mrb[0].mxu0 %v495
        %v645 = vpop.f32.mrb[0].mxu0
        %v646 = vadd.f32 %v372, %v645
        %v647 = vpop.f32.mrb[0].mxu0
        %v648 = vpop.f32.mrb[0].mxu0
        %v649 = vadd.f32 %v372, %v648
        %v650 = vpop.f32.mrb[0].mxu0
        %651 = vmatprep.mubr.bf16.mxu0 0
        %652 = vmatmul.mubr.bf16.gmra.mrb[0].mxu0 %v498
        %v653 = vpop.f32.mrb[0].mxu0
        %v654 = vadd.f32 %v372, %v653
        %v655 = vpop.f32.mrb[0].mxu0
        %v656 = vpop.f32.mrb[0].mxu0
        %v657 = vadd.f32 %v372, %v656
        %v658 = vpop.f32.mrb[0].mxu0
        %659 = vmatprep.mubr.bf16.mxu0 0
        %660 = vmatmul.mubr.bf16.gmra.mrb[0].mxu0 %v501
        %v661 = vpop.f32.mrb[0].mxu0
        %v662 = vadd.f32 %v372, %v661
        %v663 = vpop.f32.mrb[0].mxu0
        %v664 = vpop.f32.mrb[0].mxu0
        %v665 = vadd.f32 %v372, %v664
        %v666 = vpop.f32.mrb[0].mxu0
        %667 = vdwg.mxu0
        %v668 = vmax.f32 %v542, 0.0
        %v669 = vmax.f32 %v545, 0.0
        %v670 = vmax.f32 %v550, 0.0
        %v671 = vmax.f32 %v553, 0.0
        %v672 = vmax.f32 %v558, 0.0
        %v673 = vmax.f32 %v561, 0.0
        %v674 = vmax.f32 %v566, 0.0
        %v675 = vmax.f32 %v569, 0.0
        %v676 = vmax.f32 %v574, 0.0
        %v677 = vmax.f32 %v577, 0.0
        %v678 = vmax.f32 %v582, 0.0
        %v679 = vmax.f32 %v585, 0.0
        %v680 = vmax.f32 %v590, 0.0
        %v681 = vmax.f32 %v593, 0.0
        %v682 = vmax.f32 %v598, 0.0
        %v683 = vmax.f32 %v601, 0.0
        %v684 = vmax.f32 %v606, 0.0
        %v685 = vmax.f32 %v609, 0.0
        %v686 = vmax.f32 %v614, 0.0
        %v687 = vmax.f32 %v617, 0.0
        %v688 = vmax.f32 %v622, 0.0
        %v689 = vmax.f32 %v625, 0.0
        %v690 = vmax.f32 %v630, 0.0
        %v691 = vmax.f32 %v633, 0.0
        %v692 = vmax.f32 %v638, 0.0
        %v693 = vmax.f32 %v641, 0.0
        %v694 = vmax.f32 %v646, 0.0
        %v695 = vmax.f32 %v649, 0.0
        %v696 = vmax.f32 %v654, 0.0
        %v697 = vmax.f32 %v657, 0.0
        %v698 = vmax.f32 %v662, 0.0
        %v699 = vmax.f32 %v665, 0.0
        %v700 = vpack.c.bf16 %v669, %v668
        %v701 = vpack.c.bf16 %v671, %v670
        %v702 = vpack.c.bf16 %v673, %v672
        %v703 = vpack.c.bf16 %v675, %v674
        %v704 = vpack.c.bf16 %v677, %v676
        %v705 = vpack.c.bf16 %v679, %v678
        %v706 = vpack.c.bf16 %v681, %v680
        %v707 = vpack.c.bf16 %v683, %v682
        %v708 = vpack.c.bf16 %v685, %v684
        %v709 = vpack.c.bf16 %v687, %v686
        %v710 = vpack.c.bf16 %v689, %v688
        %v711 = vpack.c.bf16 %v691, %v690
        %v712 = vpack.c.bf16 %v693, %v692
        %v713 = vpack.c.bf16 %v695, %v694
        %v714 = vpack.c.bf16 %v697, %v696
        %v715 = vpack.c.bf16 %v699, %v698
        %v717 = vshrl.u32 %v700, 16
        %v719 = vrot.slane %v717, 7
        %v720 = vshll.u32 %v700, 16
        %v722 = vor.u32 %v719, %v720
        %v724 = vshrl.u32 %v701, 16
        %v726 = vrot.slane %v724, 7
        %v727 = vshll.u32 %v701, 16
        %v729 = vor.u32 %v726, %v727
        %v731 = vshrl.u32 %v702, 16
        %v733 = vrot.slane %v731, 7
        %v734 = vshll.u32 %v702, 16
        %v736 = vor.u32 %v733, %v734
        %v738 = vshrl.u32 %v703, 16
        %v740 = vrot.slane %v738, 7
        %v741 = vshll.u32 %v703, 16
        %v743 = vor.u32 %v740, %v741
        %v745 = vshrl.u32 %v704, 16
        %v747 = vrot.slane %v745, 7
        %v748 = vshll.u32 %v704, 16
        %v750 = vor.u32 %v747, %v748
        %v752 = vshrl.u32 %v705, 16
        %v754 = vrot.slane %v752, 7
        %v755 = vshll.u32 %v705, 16
        %v757 = vor.u32 %v754, %v755
        %v759 = vshrl.u32 %v706, 16
        %v761 = vrot.slane %v759, 7
        %v762 = vshll.u32 %v706, 16
        %v764 = vor.u32 %v761, %v762
        %v766 = vshrl.u32 %v707, 16
        %v768 = vrot.slane %v766, 7
        %v769 = vshll.u32 %v707, 16
        %v771 = vor.u32 %v768, %v769
        %v773 = vshrl.u32 %v708, 16
        %v775 = vrot.slane %v773, 7
        %v776 = vshll.u32 %v708, 16
        %v778 = vor.u32 %v775, %v776
        %v780 = vshrl.u32 %v709, 16
        %v782 = vrot.slane %v780, 7
        %v783 = vshll.u32 %v709, 16
        %v785 = vor.u32 %v782, %v783
        %v787 = vshrl.u32 %v710, 16
        %v789 = vrot.slane %v787, 7
        %v790 = vshll.u32 %v710, 16
        %v792 = vor.u32 %v789, %v790
        %v794 = vshrl.u32 %v711, 16
        %v796 = vrot.slane %v794, 7
        %v797 = vshll.u32 %v711, 16
        %v799 = vor.u32 %v796, %v797
        %v801 = vshrl.u32 %v712, 16
        %v803 = vrot.slane %v801, 7
        %v804 = vshll.u32 %v712, 16
        %v806 = vor.u32 %v803, %v804
        %v808 = vshrl.u32 %v713, 16
        %v810 = vrot.slane %v808, 7
        %v811 = vshll.u32 %v713, 16
        %v813 = vor.u32 %v810, %v811
        %v815 = vshrl.u32 %v714, 16
        %v817 = vrot.slane %v815, 7
        %v818 = vshll.u32 %v714, 16
        %v820 = vor.u32 %v817, %v818
        %v822 = vshrl.u32 %v715, 16
        %v824 = vrot.slane %v822, 7
        %v825 = vshll.u32 %v715, 16
        %v827 = vor.u32 %v824, %v825
        %vm860 = vcmask 1040384
        %vm861 = vsmask.f32 256
        %vm862 = vmand %vm860, %vm861
        %v863 = vsel %vm862, 0, %v722
        %v864 = vsel %vm862, 0, %v729
        %v865 = vsel %vm862, 0, %v736
        %v866 = vsel %vm862, 0, %v743
        %v867 = vsel %vm862, 0, %v750
        %v868 = vsel %vm862, 0, %v757
        %v869 = vsel %vm862, 0, %v764
        %v870 = vsel %vm862, 0, %v771
        %v871 = vsel %vm862, 0, %v778
        %v872 = vsel %vm862, 0, %v785
        %v873 = vsel %vm862, 0, %v792
        %v874 = vsel %vm862, 0, %v799
        %v875 = vsel %vm862, 0, %v806
        %v876 = vsel %vm862, 0, %v813
        %v877 = vsel %vm862, 0, %v820
        %v878 = vsel %vm862, 0, %v827
        %v879 = vsel %vm862, %v719, 0
        %v880 = vsel %vm862, %v726, 0
        %v881 = vsel %vm862, %v733, 0
        %v882 = vsel %vm862, %v740, 0
        %v883 = vsel %vm862, %v747, 0
        %v884 = vsel %vm862, %v754, 0
        %v885 = vsel %vm862, %v761, 0
        %v886 = vsel %vm862, %v768, 0
        %v887 = vsel %vm862, %v775, 0
        %v888 = vsel %vm862, %v782, 0
        %v889 = vsel %vm862, %v789, 0
        %v890 = vsel %vm862, %v796, 0
        %v891 = vsel %vm862, %v803, 0
        %v892 = vsel %vm862, %v810, 0
        %v893 = vsel %vm862, %v817, 0
        %v894 = vsel %vm862, %v824, 0
        %v928 = vunpack.c.l.b16 0
        %v929 = vunpack.c.h.b16 0
        %v930 = vunpack.c.l.b16 %v863
        %v931 = vunpack.c.h.b16 %v863
        %v932 = vunpack.c.l.b16 %v879
        %v933 = vunpack.c.l.b16 %v864
        %v934 = vunpack.c.h.b16 %v864
        %v935 = vunpack.c.l.b16 %v880
        %v936 = vunpack.c.l.b16 %v865
        %v937 = vunpack.c.h.b16 %v865
        %v938 = vunpack.c.l.b16 %v881
        %v939 = vunpack.c.l.b16 %v866
        %v940 = vunpack.c.h.b16 %v866
        %v941 = vunpack.c.l.b16 %v882
        %v942 = vunpack.c.l.b16 %v867
        %v943 = vunpack.c.h.b16 %v867
        %v944 = vunpack.c.l.b16 %v883
        %v945 = vunpack.c.l.b16 %v868
        %v946 = vunpack.c.h.b16 %v868
        %v947 = vunpack.c.l.b16 %v884
        %v948 = vunpack.c.l.b16 %v869
        %v949 = vunpack.c.h.b16 %v869
        %v950 = vunpack.c.l.b16 %v885
        %v951 = vunpack.c.l.b16 %v870
        %v952 = vunpack.c.h.b16 %v870
        %v953 = vunpack.c.l.b16 %v886
        %v954 = vunpack.c.l.b16 %v871
        %v955 = vunpack.c.h.b16 %v871
        %v956 = vunpack.c.l.b16 %v887
        %v957 = vunpack.c.l.b16 %v872
        %v958 = vunpack.c.h.b16 %v872
        %v959 = vunpack.c.l.b16 %v888
        %v960 = vunpack.c.l.b16 %v873
        %v961 = vunpack.c.h.b16 %v873
        %v962 = vunpack.c.l.b16 %v889
        %v963 = vunpack.c.l.b16 %v874
        %v964 = vunpack.c.h.b16 %v874
        %v965 = vunpack.c.l.b16 %v890
        %v966 = vunpack.c.l.b16 %v875
        %v967 = vunpack.c.h.b16 %v875
        %v968 = vunpack.c.l.b16 %v891
        %v969 = vunpack.c.l.b16 %v876
        %v970 = vunpack.c.h.b16 %v876
        %v971 = vunpack.c.l.b16 %v892
        %v972 = vunpack.c.l.b16 %v877
        %v973 = vunpack.c.h.b16 %v877
        %v974 = vunpack.c.l.b16 %v893
        %v975 = vunpack.c.l.b16 %v878
        %v976 = vunpack.c.h.b16 %v878
        %v977 = vunpack.c.l.b16 %v894
        %v978 = vpack.c.b16 %v928, %v928
        %v979 = vpack.c.b16 %v929, %v929
        %v980 = vpack.c.b16 %v930, %v930
        %v981 = vpack.c.b16 %v931, %v931
        %v982 = vpack.c.b16 %v932, %v932
        %v983 = vpack.c.b16 %v933, %v933
        %v984 = vpack.c.b16 %v934, %v934
        %v985 = vpack.c.b16 %v935, %v935
        %v986 = vpack.c.b16 %v936, %v936
        %v987 = vpack.c.b16 %v937, %v937
        %v988 = vpack.c.b16 %v938, %v938
        %v989 = vpack.c.b16 %v939, %v939
        %v990 = vpack.c.b16 %v940, %v940
        %v991 = vpack.c.b16 %v941, %v941
        %v992 = vpack.c.b16 %v942, %v942
        %v993 = vpack.c.b16 %v943, %v943
        %v994 = vpack.c.b16 %v944, %v944
        %v995 = vpack.c.b16 %v945, %v945
        %v996 = vpack.c.b16 %v946, %v946
        %v997 = vpack.c.b16 %v947, %v947
        %v998 = vpack.c.b16 %v948, %v948
        %v999 = vpack.c.b16 %v949, %v949
        %v1000 = vpack.c.b16 %v950, %v950
        %v1001 = vpack.c.b16 %v951, %v951
        %v1002 = vpack.c.b16 %v952, %v952
        %v1003 = vpack.c.b16 %v953, %v953
        %v1004 = vpack.c.b16 %v954, %v954
        %v1005 = vpack.c.b16 %v955, %v955
        %v1006 = vpack.c.b16 %v956, %v956
        %v1007 = vpack.c.b16 %v957, %v957
        %v1008 = vpack.c.b16 %v958, %v958
        %v1009 = vpack.c.b16 %v959, %v959
        %v1010 = vpack.c.b16 %v960, %v960
        %v1011 = vpack.c.b16 %v961, %v961
        %v1012 = vpack.c.b16 %v962, %v962
        %v1013 = vpack.c.b16 %v963, %v963
        %v1014 = vpack.c.b16 %v964, %v964
        %v1015 = vpack.c.b16 %v965, %v965
        %v1016 = vpack.c.b16 %v966, %v966
        %v1017 = vpack.c.b16 %v967, %v967
        %v1018 = vpack.c.b16 %v968, %v968
        %v1019 = vpack.c.b16 %v969, %v969
        %v1020 = vpack.c.b16 %v970, %v970
        %v1021 = vpack.c.b16 %v971, %v971
        %v1022 = vpack.c.b16 %v972, %v972
        %v1023 = vpack.c.b16 %v973, %v973
        %v1024 = vpack.c.b16 %v974, %v974
        %v1025 = vpack.c.b16 %v975, %v975
        %v1026 = vpack.c.b16 %v976, %v976
        %v1027 = vpack.c.b16 %v977, %v977
        %vm1078 = vcmask 125952
        %1079 = vst.msk [vmem:[#allocation2] sm:$0xf] %vm1078, %v978
        %1080 = vst.msk [vmem:[#allocation2 + $0x4] sm:$0xf] %vm1078, %v979
        %vm1081 = vcmask 122880
        %1082 = vst.msk [vmem:[#allocation2 + $0x8] sm:$0x1] %vm1081, %v978
        %1083 = vst.msk [vmem:[#allocation2 + $0xc] sm:$0xf] %vm1078, %v980
        %1084 = vst.msk [vmem:[#allocation2 + $0x10] sm:$0xf] %vm1078, %v981
        %1085 = vst.msk [vmem:[#allocation2 + $0x14] sm:$0x1] %vm1081, %v982
        %1086 = vst.msk [vmem:[#allocation2 + $0x18] sm:$0xf] %vm1078, %v983
        %1087 = vst.msk [vmem:[#allocation2 + $0x1c] sm:$0xf] %vm1078, %v984
        %1088 = vst.msk [vmem:[#allocation2 + $0x20] sm:$0x1] %vm1081, %v985
        %1089 = vst.msk [vmem:[#allocation2 + $0x24] sm:$0xf] %vm1078, %v986
        %1090 = vst.msk [vmem:[#allocation2 + $0x28] sm:$0xf] %vm1078, %v987
        %1091 = vst.msk [vmem:[#allocation2 + $0x2c] sm:$0x1] %vm1081, %v988
        %1092 = vst.msk [vmem:[#allocation2 + $0x30] sm:$0xf] %vm1078, %v989
        %1093 = vst.msk [vmem:[#allocation2 + $0x34] sm:$0xf] %vm1078, %v990
        %1094 = vst.msk [vmem:[#allocation2 + $0x38] sm:$0x1] %vm1081, %v991
        %1095 = vst.msk [vmem:[#allocation2 + $0x3c] sm:$0xf] %vm1078, %v992
        %1096 = vst.msk [vmem:[#allocation2 + $0x40] sm:$0xf] %vm1078, %v993
        %1097 = vst.msk [vmem:[#allocation2 + $0x44] sm:$0x1] %vm1081, %v994
        %1098 = vst.msk [vmem:[#allocation2 + $0x48] sm:$0xf] %vm1078, %v995
        %1099 = vst.msk [vmem:[#allocation2 + $0x4c] sm:$0xf] %vm1078, %v996
        %1100 = vst.msk [vmem:[#allocation2 + $0x50] sm:$0x1] %vm1081, %v997
        %1101 = vst.msk [vmem:[#allocation2 + $0x54] sm:$0xf] %vm1078, %v998
        %1102 = vst.msk [vmem:[#allocation2 + $0x58] sm:$0xf] %vm1078, %v999
        %1103 = vst.msk [vmem:[#allocation2 + $0x5c] sm:$0x1] %vm1081, %v1000
        %1104 = vst.msk [vmem:[#allocation2 + $0x60] sm:$0xf] %vm1078, %v1001
        %1105 = vst.msk [vmem:[#allocation2 + $0x64] sm:$0xf] %vm1078, %v1002
        %1106 = vst.msk [vmem:[#allocation2 + $0x68] sm:$0x1] %vm1081, %v1003
        %1107 = vst.msk [vmem:[#allocation2 + $0x6c] sm:$0xf] %vm1078, %v1004
        %1108 = vst.msk [vmem:[#allocation2 + $0x70] sm:$0xf] %vm1078, %v1005
        %1109 = vst.msk [vmem:[#allocation2 + $0x74] sm:$0x1] %vm1081, %v1006
        %1110 = vst.msk [vmem:[#allocation2 + $0x78] sm:$0xf] %vm1078, %v1007
        %1111 = vst.msk [vmem:[#allocation2 + $0x7c] sm:$0xf] %vm1078, %v1008
        %1112 = vst.msk [vmem:[#allocation2 + $0x80] sm:$0x1] %vm1081, %v1009
        %1113 = vst.msk [vmem:[#allocation2 + $0x84] sm:$0xf] %vm1078, %v1010
        %1114 = vst.msk [vmem:[#allocation2 + $0x88] sm:$0xf] %vm1078, %v1011
        %1115 = vst.msk [vmem:[#allocation2 + $0x8c] sm:$0x1] %vm1081, %v1012
        %1116 = vst.msk [vmem:[#allocation2 + $0x90] sm:$0xf] %vm1078, %v1013
        %1117 = vst.msk [vmem:[#allocation2 + $0x94] sm:$0xf] %vm1078, %v1014
        %1118 = vst.msk [vmem:[#allocation2 + $0x98] sm:$0x1] %vm1081, %v1015
        %1119 = vst.msk [vmem:[#allocation2 + $0x9c] sm:$0xf] %vm1078, %v1016
        %1120 = vst.msk [vmem:[#allocation2 + $0xa0] sm:$0xf] %vm1078, %v1017
        %1121 = vst.msk [vmem:[#allocation2 + $0xa4] sm:$0x1] %vm1081, %v1018
        %1122 = vst.msk [vmem:[#allocation2 + $0xa8] sm:$0xf] %vm1078, %v1019
        %1123 = vst.msk [vmem:[#allocation2 + $0xac] sm:$0xf] %vm1078, %v1020
        %1124 = vst.msk [vmem:[#allocation2 + $0xb0] sm:$0x1] %vm1081, %v1021
        %1125 = vst.msk [vmem:[#allocation2 + $0xb4] sm:$0xf] %vm1078, %v1022
        %1126 = vst.msk [vmem:[#allocation2 + $0xb8] sm:$0xf] %vm1078, %v1023
        %1127 = vst.msk [vmem:[#allocation2 + $0xbc] sm:$0x1] %vm1081, %v1024
        %1128 = vst.msk [vmem:[#allocation2 + $0xc0] sm:$0xf] %vm1078, %v1025
        %1129 = vst.msk [vmem:[#allocation2 + $0xc4] sm:$0xf] %vm1078, %v1026
        %1130 = vst.msk [vmem:[#allocation2 + $0xc8] sm:$0x1] %vm1081, %v1027
        %1131 = vst.msk [vmem:[#allocation2 + $0xcc] sm:$0xf] %vm1078, %v978
        %1132 = vst.msk [vmem:[#allocation2 + $0xd0] sm:$0xf] %vm1078, %v979
        %1133 = vst.msk [vmem:[#allocation2 + $0xd4] sm:$0x1] %vm1081, %v978
      $region56: #{block_forward.1} parent=51 // pred_fallthru
        _
      %s1134 = smul.u32 %s24, 8
      %s1135 = smul.u32 %s1134, 3
      %s1136 = smul.addr %s1135, 4
      %s1137 = scalar_lea.vmem [#allocation2], %s1136
      %v1138 = vld [vmem:[%s1137] sm:$0xf]
      %v1139 = vld [vmem:[%s1137 + $0x4] sm:$0xf]
      %v1140 = vld [vmem:[%s1137 + $0xc] sm:$0xf]
      %v1141 = vld [vmem:[%s1137 + $0x10] sm:$0xf]
      %v1142 = vld [vmem:[%s1137 + $0x18] sm:$0xf]
      %v1143 = vld [vmem:[%s1137 + $0x1c] sm:$0xf]
      %v1144 = vld [vmem:[%s1137 + $0x24] sm:$0xf]
      %v1145 = vld [vmem:[%s1137 + $0x28] sm:$0xf]
      %v1146 = vld [vmem:[%s1137 + $0x30] sm:$0xf]
      %v1147 = vld [vmem:[%s1137 + $0x34] sm:$0xf]
      %v1148 = vld [vmem:[%s1137 + $0x3c] sm:$0xf]
      %v1149 = vld [vmem:[%s1137 + $0x40] sm:$0xf]
      %v1150 = vld [vmem:[%s1137 + $0x48] sm:$0xf]
      %v1151 = vld [vmem:[%s1137 + $0x4c] sm:$0xf]
      %v1152 = vld [vmem:[%s1137 + $0x54] sm:$0xf]
      %v1153 = vld [vmem:[%s1137 + $0x58] sm:$0xf]
      %v1154 = vld [vmem:[%s1137 + $0x8] sm:$0x1]
      %v1155 = vld [vmem:[%s1137 + $0x14] sm:$0x1]
      %v1156 = vld [vmem:[%s1137 + $0x20] sm:$0x1]
      %v1157 = vld [vmem:[%s1137 + $0x2c] sm:$0x1]
      %v1158 = vld [vmem:[%s1137 + $0x38] sm:$0x1]
      %v1159 = vld [vmem:[%s1137 + $0x44] sm:$0x1]
      %v1160 = vld [vmem:[%s1137 + $0x50] sm:$0x1]
      %v1161 = vld [vmem:[%s1137 + $0x5c] sm:$0x1]
      %v1162 = vld [vmem:[%s1137] sm:$0xe]
      %v1163 = vld [vmem:[%s1137 + $0xc] sm:$0xe]
      %v1164 = vld [vmem:[%s1137 + $0x18] sm:$0xe]
      %v1165 = vld [vmem:[%s1137 + $0x24] sm:$0xe]
      %v1166 = vld [vmem:[%s1137 + $0x30] sm:$0xe]
      %v1167 = vld [vmem:[%s1137 + $0x3c] sm:$0xe]
      %v1168 = vld [vmem:[%s1137 + $0x48] sm:$0xe]
      %v1169 = vld [vmem:[%s1137 + $0x54] sm:$0xe]
      %s1170 = sadd.s32 %s1134, 1
      %s1171 = smul.u32 %s1170, 3
      %s1172 = smul.addr %s1171, 4
      %s1173 = scalar_lea.vmem [#allocation2], %s1172
      %v1174 = vld [vmem:[%s1173] sm:$0xf]
      %v1175 = vld [vmem:[%s1173 + $0x4] sm:$0xf]
      %v1176 = vld [vmem:[%s1173 + $0xc] sm:$0xf]
      %v1177 = vld [vmem:[%s1173 + $0x10] sm:$0xf]
      %v1178 = vld [vmem:[%s1173 + $0x18] sm:$0xf]
      %v1179 = vld [vmem:[%s1173 + $0x1c] sm:$0xf]
      %v1180 = vld [vmem:[%s1173 + $0x24] sm:$0xf]
      %v1181 = vld [vmem:[%s1173 + $0x28] sm:$0xf]
      %v1182 = vld [vmem:[%s1173 + $0x30] sm:$0xf]
      %v1183 = vld [vmem:[%s1173 + $0x34] sm:$0xf]
      %v1184 = vld [vmem:[%s1173 + $0x3c] sm:$0xf]
      %v1185 = vld [vmem:[%s1173 + $0x40] sm:$0xf]
      %v1186 = vld [vmem:[%s1173 + $0x48] sm:$0xf]
      %v1187 = vld [vmem:[%s1173 + $0x4c] sm:$0xf]
      %v1188 = vld [vmem:[%s1173 + $0x54] sm:$0xf]
      %v1189 = vld [vmem:[%s1173 + $0x58] sm:$0xf]
      %v1190 = vld [vmem:[%s1173 + $0x8] sm:$0x1]
      %v1191 = vld [vmem:[%s1173 + $0x14] sm:$0x1]
      %v1192 = vld [vmem:[%s1173 + $0x20] sm:$0x1]
      %v1193 = vld [vmem:[%s1173 + $0x2c] sm:$0x1]
      %v1194 = vld [vmem:[%s1173 + $0x38] sm:$0x1]
      %v1195 = vld [vmem:[%s1173 + $0x44] sm:$0x1]
      %v1196 = vld [vmem:[%s1173 + $0x50] sm:$0x1]
      %v1197 = vld [vmem:[%s1173 + $0x5c] sm:$0x1]
      %v1198 = vld [vmem:[%s1173] sm:$0xe]
      %v1199 = vld [vmem:[%s1173 + $0xc] sm:$0xe]
      %v1200 = vld [vmem:[%s1173 + $0x18] sm:$0xe]
      %v1201 = vld [vmem:[%s1173 + $0x24] sm:$0xe]
      %v1202 = vld [vmem:[%s1173 + $0x30] sm:$0xe]
      %v1203 = vld [vmem:[%s1173 + $0x3c] sm:$0xe]
      %v1204 = vld [vmem:[%s1173 + $0x48] sm:$0xe]
      %v1205 = vld [vmem:[%s1173 + $0x54] sm:$0xe]
      %s1206 = sadd.s32 %s1134, 2
      %s1207 = smul.u32 %s1206, 3
      %s1208 = smul.addr %s1207, 4
      %s1209 = scalar_lea.vmem [#allocation2], %s1208
      %v1210 = vld [vmem:[%s1209] sm:$0xf]
      %v1211 = vld [vmem:[%s1209 + $0x4] sm:$0xf]
      %v1212 = vld [vmem:[%s1209 + $0xc] sm:$0xf]
      %v1213 = vld [vmem:[%s1209 + $0x10] sm:$0xf]
      %v1214 = vld [vmem:[%s1209 + $0x18] sm:$0xf]
      %v1215 = vld [vmem:[%s1209 + $0x1c] sm:$0xf]
      %v1216 = vld [vmem:[%s1209 + $0x24] sm:$0xf]
      %v1217 = vld [vmem:[%s1209 + $0x28] sm:$0xf]
      %v1218 = vld [vmem:[%s1209 + $0x30] sm:$0xf]
      %v1219 = vld [vmem:[%s1209 + $0x34] sm:$0xf]
      %v1220 = vld [vmem:[%s1209 + $0x3c] sm:$0xf]
      %v1221 = vld [vmem:[%s1209 + $0x40] sm:$0xf]
      %v1222 = vld [vmem:[%s1209 + $0x48] sm:$0xf]
      %v1223 = vld [vmem:[%s1209 + $0x4c] sm:$0xf]
      %v1224 = vld [vmem:[%s1209 + $0x54] sm:$0xf]
      %v1225 = vld [vmem:[%s1209 + $0x58] sm:$0xf]
      %v1226 = vld [vmem:[%s1209 + $0x8] sm:$0x1]
      %v1227 = vld [vmem:[%s1209 + $0x14] sm:$0x1]
      %v1228 = vld [vmem:[%s1209 + $0x20] sm:$0x1]
      %v1229 = vld [vmem:[%s1209 + $0x2c] sm:$0x1]
      %v1230 = vld [vmem:[%s1209 + $0x38] sm:$0x1]
      %v1231 = vld [vmem:[%s1209 + $0x44] sm:$0x1]
      %v1232 = vld [vmem:[%s1209 + $0x50] sm:$0x1]
      %v1233 = vld [vmem:[%s1209 + $0x5c] sm:$0x1]
      %v1234 = vld [vmem:[%s1209] sm:$0xe]
      %v1235 = vld [vmem:[%s1209 + $0xc] sm:$0xe]
      %v1236 = vld [vmem:[%s1209 + $0x18] sm:$0xe]
      %v1237 = vld [vmem:[%s1209 + $0x24] sm:$0xe]
      %v1238 = vld [vmem:[%s1209 + $0x30] sm:$0xe]
      %v1239 = vld [vmem:[%s1209 + $0x3c] sm:$0xe]
      %v1240 = vld [vmem:[%s1209 + $0x48] sm:$0xe]
      %v1241 = vld [vmem:[%s1209 + $0x54] sm:$0xe]
      %v1258 = vunpack.c.l.b16 %v1138
      %v1259 = vunpack.c.l.b16 %v1139
      %v1260 = vunpack.c.l.b16 %v1140
      %v1261 = vunpack.c.l.b16 %v1141
      %v1262 = vunpack.c.l.b16 %v1142
      %v1263 = vunpack.c.l.b16 %v1143
      %v1264 = vunpack.c.l.b16 %v1144
      %v1265 = vunpack.c.l.b16 %v1145
      %v1266 = vunpack.c.l.b16 %v1146
      %v1267 = vunpack.c.l.b16 %v1147
      %v1268 = vunpack.c.l.b16 %v1148
      %v1269 = vunpack.c.l.b16 %v1149
      %v1270 = vunpack.c.l.b16 %v1150
      %v1271 = vunpack.c.l.b16 %v1151
      %v1272 = vunpack.c.l.b16 %v1152
      %v1273 = vunpack.c.l.b16 %v1153
      %v1274 = vpack.c.b16 %v1259, %v1258
      %v1275 = vpack.c.b16 %v1261, %v1260
      %v1276 = vpack.c.b16 %v1263, %v1262
      %v1277 = vpack.c.b16 %v1265, %v1264
      %v1278 = vpack.c.b16 %v1267, %v1266
      %v1279 = vpack.c.b16 %v1269, %v1268
      %v1280 = vpack.c.b16 %v1271, %v1270
      %v1281 = vpack.c.b16 %v1273, %v1272
      %v1290 = vunpack.c.l.b16 %v1154
      %v1291 = vunpack.c.l.b16 %v1155
      %v1292 = vunpack.c.l.b16 %v1156
      %v1293 = vunpack.c.l.b16 %v1157
      %v1294 = vunpack.c.l.b16 %v1158
      %v1295 = vunpack.c.l.b16 %v1159
      %v1296 = vunpack.c.l.b16 %v1160
      %v1297 = vunpack.c.l.b16 %v1161
      %v1298 = vpack.c.b16 %v1290, %v1290
      %v1299 = vpack.c.b16 %v1291, %v1291
      %v1300 = vpack.c.b16 %v1292, %v1292
      %v1301 = vpack.c.b16 %v1293, %v1293
      %v1302 = vpack.c.b16 %v1294, %v1294
      %v1303 = vpack.c.b16 %v1295, %v1295
      %v1304 = vpack.c.b16 %v1296, %v1296
      %v1305 = vpack.c.b16 %v1297, %v1297
      %vm1306 = vsmask.f32 7424
      %v1308 = vshrl.u32 %v1274, 16
      %v1310 = vshll.u32 %v1274, 16
      %v1312 = vrot.slane %v1310, 1
      %v1313 = vor.u32 %v1308, %v1312
      %v1315 = vshll.u32 %v1298, 16
      %v1317 = vrot.slane %v1315, 1
      %v1318 = vsel %vm1306, %v1313, %v1317
      %v1320 = vshrl.u32 %v1275, 16
      %v1322 = vshll.u32 %v1275, 16
      %v1324 = vrot.slane %v1322, 1
      %v1325 = vor.u32 %v1320, %v1324
      %v1327 = vshll.u32 %v1299, 16
      %v1329 = vrot.slane %v1327, 1
      %v1330 = vsel %vm1306, %v1325, %v1329
      %v1332 = vshrl.u32 %v1276, 16
      %v1334 = vshll.u32 %v1276, 16
      %v1336 = vrot.slane %v1334, 1
      %v1337 = vor.u32 %v1332, %v1336
      %v1339 = vshll.u32 %v1300, 16
      %v1341 = vrot.slane %v1339, 1
      %v1342 = vsel %vm1306, %v1337, %v1341
      %v1344 = vshrl.u32 %v1277, 16
      %v1346 = vshll.u32 %v1277, 16
      %v1348 = vrot.slane %v1346, 1
      %v1349 = vor.u32 %v1344, %v1348
      %v1351 = vshll.u32 %v1301, 16
      %v1353 = vrot.slane %v1351, 1
      %v1354 = vsel %vm1306, %v1349, %v1353
      %v1356 = vshrl.u32 %v1278, 16
      %v1358 = vshll.u32 %v1278, 16
      %v1360 = vrot.slane %v1358, 1
      %v1361 = vor.u32 %v1356, %v1360
      %v1363 = vshll.u32 %v1302, 16
      %v1365 = vrot.slane %v1363, 1
      %v1366 = vsel %vm1306, %v1361, %v1365
      %v1368 = vshrl.u32 %v1279, 16
      %v1370 = vshll.u32 %v1279, 16
      %v1372 = vrot.slane %v1370, 1
      %v1373 = vor.u32 %v1368, %v1372
      %v1375 = vshll.u32 %v1303, 16
      %v1377 = vrot.slane %v1375, 1
      %v1378 = vsel %vm1306, %v1373, %v1377
      %v1380 = vshrl.u32 %v1280, 16
      %v1382 = vshll.u32 %v1280, 16
      %v1384 = vrot.slane %v1382, 1
      %v1385 = vor.u32 %v1380, %v1384
      %v1387 = vshll.u32 %v1304, 16
      %v1389 = vrot.slane %v1387, 1
      %v1390 = vsel %vm1306, %v1385, %v1389
      %v1392 = vshrl.u32 %v1281, 16
      %v1394 = vshll.u32 %v1281, 16
      %v1396 = vrot.slane %v1394, 1
      %v1397 = vor.u32 %v1392, %v1396
      %v1399 = vshll.u32 %v1305, 16
      %v1401 = vrot.slane %v1399, 1
      %v1402 = vsel %vm1306, %v1397, %v1401
      %1403 = vrot.lane.b32.xlu0 %v1318, 16
      %v1404 = vpop.permute.xlu0 %1403
      %1405 = vrot.lane.b32.xlu0 %v1330, 16
      %v1406 = vpop.permute.xlu0 %1405
      %1407 = vrot.lane.b32.xlu0 %v1342, 16
      %v1408 = vpop.permute.xlu0 %1407
      %1409 = vrot.lane.b32.xlu0 %v1354, 16
      %v1410 = vpop.permute.xlu0 %1409
      %1411 = vrot.lane.b32.xlu0 %v1366, 16
      %v1412 = vpop.permute.xlu0 %1411
      %1413 = vrot.lane.b32.xlu0 %v1378, 16
      %v1414 = vpop.permute.xlu0 %1413
      %1415 = vrot.lane.b32.xlu0 %v1390, 16
      %v1416 = vpop.permute.xlu0 %1415
      %1417 = vrot.lane.b32.xlu0 %v1402, 16
      %v1418 = vpop.permute.xlu0 %1417
      %v1427 = vunpack.c.l.b16 %v1162
      %v1428 = vunpack.c.l.b16 %v1163
      %v1429 = vunpack.c.l.b16 %v1164
      %v1430 = vunpack.c.l.b16 %v1165
      %v1431 = vunpack.c.l.b16 %v1166
      %v1432 = vunpack.c.l.b16 %v1167
      %v1433 = vunpack.c.l.b16 %v1168
      %v1434 = vunpack.c.l.b16 %v1169
      %v1435 = vpack.c.b16 %v1259, %v1427
      %v1436 = vpack.c.b16 %v1261, %v1428
      %v1437 = vpack.c.b16 %v1263, %v1429
      %v1438 = vpack.c.b16 %v1265, %v1430
      %v1439 = vpack.c.b16 %v1267, %v1431
      %v1440 = vpack.c.b16 %v1269, %v1432
      %v1441 = vpack.c.b16 %v1271, %v1433
      %v1442 = vpack.c.b16 %v1273, %v1434
      %vm1443 = vcmask 1046528
      %v1444 = vrot.slane %v1435, 1
      %v1445 = vrot.slane %v1298, 1
      %v1446 = vsel %vm1443, %v1444, %v1445
      %v1447 = vrot.slane %v1436, 1
      %v1448 = vrot.slane %v1299, 1
      %v1449 = vsel %vm1443, %v1447, %v1448
      %v1450 = vrot.slane %v1437, 1
      %v1451 = vrot.slane %v1300, 1
      %v1452 = vsel %vm1443, %v1450, %v1451
      %v1453 = vrot.slane %v1438, 1
      %v1454 = vrot.slane %v1301, 1
      %v1455 = vsel %vm1443, %v1453, %v1454
      %v1456 = vrot.slane %v1439, 1
      %v1457 = vrot.slane %v1302, 1
      %v1458 = vsel %vm1443, %v1456, %v1457
      %v1459 = vrot.slane %v1440, 1
      %v1460 = vrot.slane %v1303, 1
      %v1461 = vsel %vm1443, %v1459, %v1460
      %v1462 = vrot.slane %v1441, 1
      %v1463 = vrot.slane %v1304, 1
      %v1464 = vsel %vm1443, %v1462, %v1463
      %v1465 = vrot.slane %v1442, 1
      %v1466 = vrot.slane %v1305, 1
      %v1467 = vsel %vm1443, %v1465, %v1466
      %1468 = vrot.lane.b32.xlu0 %v1446, 32
      %v1469 = vpop.permute.xlu0 %1468
      %1470 = vrot.lane.b32.xlu0 %v1449, 32
      %v1471 = vpop.permute.xlu0 %1470
      %1472 = vrot.lane.b32.xlu0 %v1452, 32
      %v1473 = vpop.permute.xlu0 %1472
      %1474 = vrot.lane.b32.xlu0 %v1455, 32
      %v1475 = vpop.permute.xlu0 %1474
      %1476 = vrot.lane.b32.xlu0 %v1458, 32
      %v1477 = vpop.permute.xlu0 %1476
      %1478 = vrot.lane.b32.xlu0 %v1461, 32
      %v1479 = vpop.permute.xlu0 %1478
      %1480 = vrot.lane.b32.xlu0 %v1464, 32
      %v1481 = vpop.permute.xlu0 %1480
      %1482 = vrot.lane.b32.xlu0 %v1467, 32
      %v1483 = vpop.permute.xlu0 %1482
      %v1500 = vunpack.c.l.b16 %v1174
      %v1501 = vunpack.c.l.b16 %v1175
      %v1502 = vunpack.c.l.b16 %v1176
      %v1503 = vunpack.c.l.b16 %v1177
      %v1504 = vunpack.c.l.b16 %v1178
      %v1505 = vunpack.c.l.b16 %v1179
      %v1506 = vunpack.c.l.b16 %v1180
      %v1507 = vunpack.c.l.b16 %v1181
      %v1508 = vunpack.c.l.b16 %v1182
      %v1509 = vunpack.c.l.b16 %v1183
      %v1510 = vunpack.c.l.b16 %v1184
      %v1511 = vunpack.c.l.b16 %v1185
      %v1512 = vunpack.c.l.b16 %v1186
      %v1513 = vunpack.c.l.b16 %v1187
      %v1514 = vunpack.c.l.b16 %v1188
      %v1515 = vunpack.c.l.b16 %v1189
      %v1516 = vpack.c.b16 %v1501, %v1500
      %v1517 = vpack.c.b16 %v1503, %v1502
      %v1518 = vpack.c.b16 %v1505, %v1504
      %v1519 = vpack.c.b16 %v1507, %v1506
      %v1520 = vpack.c.b16 %v1509, %v1508
      %v1521 = vpack.c.b16 %v1511, %v1510
      %v1522 = vpack.c.b16 %v1513, %v1512
      %v1523 = vpack.c.b16 %v1515, %v1514
      %1524 = vrot.lane.b32.xlu0 %v1516, 48
      %v1525 = vpop.permute.xlu0 %1524
      %1526 = vrot.lane.b32.xlu0 %v1517, 48
      %v1527 = vpop.permute.xlu0 %1526
      %1528 = vrot.lane.b32.xlu0 %v1518, 48
      %v1529 = vpop.permute.xlu0 %1528
      %1530 = vrot.lane.b32.xlu0 %v1519, 48
      %v1531 = vpop.permute.xlu0 %1530
      %1532 = vrot.lane.b32.xlu0 %v1520, 48
      %v1533 = vpop.permute.xlu0 %1532
      %1534 = vrot.lane.b32.xlu0 %v1521, 48
      %v1535 = vpop.permute.xlu0 %1534
      %1536 = vrot.lane.b32.xlu0 %v1522, 48
      %v1537 = vpop.permute.xlu0 %1536
      %1538 = vrot.lane.b32.xlu0 %v1523, 48
      %v1539 = vpop.permute.xlu0 %1538
      %v1548 = vunpack.c.l.b16 %v1190
      %v1549 = vunpack.c.l.b16 %v1191
      %v1550 = vunpack.c.l.b16 %v1192
      %v1551 = vunpack.c.l.b16 %v1193
      %v1552 = vunpack.c.l.b16 %v1194
      %v1553 = vunpack.c.l.b16 %v1195
      %v1554 = vunpack.c.l.b16 %v1196
      %v1555 = vunpack.c.l.b16 %v1197
      %v1556 = vpack.c.b16 %v1548, %v1548
      %v1557 = vpack.c.b16 %v1549, %v1549
      %v1558 = vpack.c.b16 %v1550, %v1550
      %v1559 = vpack.c.b16 %v1551, %v1551
      %v1560 = vpack.c.b16 %v1552, %v1552
      %v1561 = vpack.c.b16 %v1553, %v1553
      %v1562 = vpack.c.b16 %v1554, %v1554
      %v1563 = vpack.c.b16 %v1555, %v1555
      %v1565 = vshrl.u32 %v1516, 16
      %v1567 = vshll.u32 %v1516, 16
      %v1569 = vrot.slane %v1567, 1
      %v1570 = vor.u32 %v1565, %v1569
      %v1572 = vshll.u32 %v1556, 16
      %v1574 = vrot.slane %v1572, 1
      %v1575 = vsel %vm1306, %v1570, %v1574
      %v1577 = vshrl.u32 %v1517, 16
      %v1579 = vshll.u32 %v1517, 16
      %v1581 = vrot.slane %v1579, 1
      %v1582 = vor.u32 %v1577, %v1581
      %v1584 = vshll.u32 %v1557, 16
      %v1586 = vrot.slane %v1584, 1
      %v1587 = vsel %vm1306, %v1582, %v1586
      %v1589 = vshrl.u32 %v1518, 16
      %v1591 = vshll.u32 %v1518, 16
      %v1593 = vrot.slane %v1591, 1
      %v1594 = vor.u32 %v1589, %v1593
      %v1596 = vshll.u32 %v1558, 16
      %v1598 = vrot.slane %v1596, 1
      %v1599 = vsel %vm1306, %v1594, %v1598
      %v1601 = vshrl.u32 %v1519, 16
      %v1603 = vshll.u32 %v1519, 16
      %v1605 = vrot.slane %v1603, 1
      %v1606 = vor.u32 %v1601, %v1605
      %v1608 = vshll.u32 %v1559, 16
      %v1610 = vrot.slane %v1608, 1
      %v1611 = vsel %vm1306, %v1606, %v1610
      %v1613 = vshrl.u32 %v1520, 16
      %v1615 = vshll.u32 %v1520, 16
      %v1617 = vrot.slane %v1615, 1
      %v1618 = vor.u32 %v1613, %v1617
      %v1620 = vshll.u32 %v1560, 16
      %v1622 = vrot.slane %v1620, 1
      %v1623 = vsel %vm1306, %v1618, %v1622
      %v1625 = vshrl.u32 %v1521, 16
      %v1627 = vshll.u32 %v1521, 16
      %v1629 = vrot.slane %v1627, 1
      %v1630 = vor.u32 %v1625, %v1629
      %v1632 = vshll.u32 %v1561, 16
      %v1634 = vrot.slane %v1632, 1
      %v1635 = vsel %vm1306, %v1630, %v1634
      %v1637 = vshrl.u32 %v1522, 16
      %v1639 = vshll.u32 %v1522, 16
      %v1641 = vrot.slane %v1639, 1
      %v1642 = vor.u32 %v1637, %v1641
      %v1644 = vshll.u32 %v1562, 16
      %v1646 = vrot.slane %v1644, 1
      %v1647 = vsel %vm1306, %v1642, %v1646
      %v1649 = vshrl.u32 %v1523, 16
      %v1651 = vshll.u32 %v1523, 16
      %v1653 = vrot.slane %v1651, 1
      %v1654 = vor.u32 %v1649, %v1653
      %v1656 = vshll.u32 %v1563, 16
      %v1658 = vrot.slane %v1656, 1
      %v1659 = vsel %vm1306, %v1654, %v1658
      %1660 = vrot.lane.b32.xlu0 %v1575, 64
      %v1661 = vpop.permute.xlu0 %1660
      %1662 = vrot.lane.b32.xlu0 %v1587, 64
      %v1663 = vpop.permute.xlu0 %1662
      %1664 = vrot.lane.b32.xlu0 %v1599, 64
      %v1665 = vpop.permute.xlu0 %1664
      %1666 = vrot.lane.b32.xlu0 %v1611, 64
      %v1667 = vpop.permute.xlu0 %1666
      %1668 = vrot.lane.b32.xlu0 %v1623, 64
      %v1669 = vpop.permute.xlu0 %1668
      %1670 = vrot.lane.b32.xlu0 %v1635, 64
      %v1671 = vpop.permute.xlu0 %1670
      %1672 = vrot.lane.b32.xlu0 %v1647, 64
      %v1673 = vpop.permute.xlu0 %1672
      %1674 = vrot.lane.b32.xlu0 %v1659, 64
      %v1675 = vpop.permute.xlu0 %1674
      %v1684 = vunpack.c.l.b16 %v1198
      %v1685 = vunpack.c.l.b16 %v1199
      %v1686 = vunpack.c.l.b16 %v1200
      %v1687 = vunpack.c.l.b16 %v1201
      %v1688 = vunpack.c.l.b16 %v1202
      %v1689 = vunpack.c.l.b16 %v1203
      %v1690 = vunpack.c.l.b16 %v1204
      %v1691 = vunpack.c.l.b16 %v1205
      %v1692 = vpack.c.b16 %v1501, %v1684
      %v1693 = vpack.c.b16 %v1503, %v1685
      %v1694 = vpack.c.b16 %v1505, %v1686
      %v1695 = vpack.c.b16 %v1507, %v1687
      %v1696 = vpack.c.b16 %v1509, %v1688
      %v1697 = vpack.c.b16 %v1511, %v1689
      %v1698 = vpack.c.b16 %v1513, %v1690
      %v1699 = vpack.c.b16 %v1515, %v1691
      %v1700 = vrot.slane %v1692, 1
      %v1701 = vrot.slane %v1556, 1
      %v1702 = vsel %vm1443, %v1700, %v1701
      %v1703 = vrot.slane %v1693, 1
      %v1704 = vrot.slane %v1557, 1
      %v1705 = vsel %vm1443, %v1703, %v1704
      %v1706 = vrot.slane %v1694, 1
      %v1707 = vrot.slane %v1558, 1
      %v1708 = vsel %vm1443, %v1706, %v1707
      %v1709 = vrot.slane %v1695, 1
      %v1710 = vrot.slane %v1559, 1
      %v1711 = vsel %vm1443, %v1709, %v1710
      %v1712 = vrot.slane %v1696, 1
      %v1713 = vrot.slane %v1560, 1
      %v1714 = vsel %vm1443, %v1712, %v1713
      %v1715 = vrot.slane %v1697, 1
      %v1716 = vrot.slane %v1561, 1
      %v1717 = vsel %vm1443, %v1715, %v1716
      %v1718 = vrot.slane %v1698, 1
      %v1719 = vrot.slane %v1562, 1
      %v1720 = vsel %vm1443, %v1718, %v1719
      %v1721 = vrot.slane %v1699, 1
      %v1722 = vrot.slane %v1563, 1
      %v1723 = vsel %vm1443, %v1721, %v1722
      %1724 = vrot.lane.b32.xlu0 %v1702, 80
      %v1725 = vpop.permute.xlu0 %1724
      %1726 = vrot.lane.b32.xlu0 %v1705, 80
      %v1727 = vpop.permute.xlu0 %1726
      %1728 = vrot.lane.b32.xlu0 %v1708, 80
      %v1729 = vpop.permute.xlu0 %1728
      %1730 = vrot.lane.b32.xlu0 %v1711, 80
      %v1731 = vpop.permute.xlu0 %1730
      %1732 = vrot.lane.b32.xlu0 %v1714, 80
      %v1733 = vpop.permute.xlu0 %1732
      %1734 = vrot.lane.b32.xlu0 %v1717, 80
      %v1735 = vpop.permute.xlu0 %1734
      %1736 = vrot.lane.b32.xlu0 %v1720, 80
      %v1737 = vpop.permute.xlu0 %1736
      %1738 = vrot.lane.b32.xlu0 %v1723, 80
      %v1739 = vpop.permute.xlu0 %1738
      %v1756 = vunpack.c.l.b16 %v1210
      %v1757 = vunpack.c.l.b16 %v1211
      %v1758 = vunpack.c.l.b16 %v1212
      %v1759 = vunpack.c.l.b16 %v1213
      %v1760 = vunpack.c.l.b16 %v1214
      %v1761 = vunpack.c.l.b16 %v1215
      %v1762 = vunpack.c.l.b16 %v1216
      %v1763 = vunpack.c.l.b16 %v1217
      %v1764 = vunpack.c.l.b16 %v1218
      %v1765 = vunpack.c.l.b16 %v1219
      %v1766 = vunpack.c.l.b16 %v1220
      %v1767 = vunpack.c.l.b16 %v1221
      %v1768 = vunpack.c.l.b16 %v1222
      %v1769 = vunpack.c.l.b16 %v1223
      %v1770 = vunpack.c.l.b16 %v1224
      %v1771 = vunpack.c.l.b16 %v1225
      %v1772 = vpack.c.b16 %v1757, %v1756
      %v1773 = vpack.c.b16 %v1759, %v1758
      %v1774 = vpack.c.b16 %v1761, %v1760
      %v1775 = vpack.c.b16 %v1763, %v1762
      %v1776 = vpack.c.b16 %v1765, %v1764
      %v1777 = vpack.c.b16 %v1767, %v1766
      %v1778 = vpack.c.b16 %v1769, %v1768
      %v1779 = vpack.c.b16 %v1771, %v1770
      %1780 = vrot.lane.b32.xlu0 %v1772, 96
      %v1781 = vpop.permute.xlu0 %1780
      %1782 = vrot.lane.b32.xlu0 %v1773, 96
      %v1783 = vpop.permute.xlu0 %1782
      %1784 = vrot.lane.b32.xlu0 %v1774, 96
      %v1785 = vpop.permute.xlu0 %1784
      %1786 = vrot.lane.b32.xlu0 %v1775, 96
      %v1787 = vpop.permute.xlu0 %1786
      %1788 = vrot.lane.b32.xlu0 %v1776, 96
      %v1789 = vpop.permute.xlu0 %1788
      %1790 = vrot.lane.b32.xlu0 %v1777, 96
      %v1791 = vpop.permute.xlu0 %1790
      %1792 = vrot.lane.b32.xlu0 %v1778, 96
      %v1793 = vpop.permute.xlu0 %1792
      %1794 = vrot.lane.b32.xlu0 %v1779, 96
      %v1795 = vpop.permute.xlu0 %1794
      %v1804 = vunpack.c.l.b16 %v1226
      %v1805 = vunpack.c.l.b16 %v1227
      %v1806 = vunpack.c.l.b16 %v1228
      %v1807 = vunpack.c.l.b16 %v1229
      %v1808 = vunpack.c.l.b16 %v1230
      %v1809 = vunpack.c.l.b16 %v1231
      %v1810 = vunpack.c.l.b16 %v1232
      %v1811 = vunpack.c.l.b16 %v1233
      %v1812 = vpack.c.b16 %v1804, %v1804
      %v1813 = vpack.c.b16 %v1805, %v1805
      %v1814 = vpack.c.b16 %v1806, %v1806
      %v1815 = vpack.c.b16 %v1807, %v1807
      %v1816 = vpack.c.b16 %v1808, %v1808
      %v1817 = vpack.c.b16 %v1809, %v1809
      %v1818 = vpack.c.b16 %v1810, %v1810
      %v1819 = vpack.c.b16 %v1811, %v1811
      %v1821 = vshrl.u32 %v1772, 16
      %v1823 = vshll.u32 %v1772, 16
      %v1825 = vrot.slane %v1823, 1
      %v1826 = vor.u32 %v1821, %v1825
      %v1828 = vshll.u32 %v1812, 16
      %v1830 = vrot.slane %v1828, 1
      %v1831 = vsel %vm1306, %v1826, %v1830
      %v1833 = vshrl.u32 %v1773, 16
      %v1835 = vshll.u32 %v1773, 16
      %v1837 = vrot.slane %v1835, 1
      %v1838 = vor.u32 %v1833, %v1837
      %v1840 = vshll.u32 %v1813, 16
      %v1842 = vrot.slane %v1840, 1
      %v1843 = vsel %vm1306, %v1838, %v1842
      %v1845 = vshrl.u32 %v1774, 16
      %v1847 = vshll.u32 %v1774, 16
      %v1849 = vrot.slane %v1847, 1
      %v1850 = vor.u32 %v1845, %v1849
      %v1852 = vshll.u32 %v1814, 16
      %v1854 = vrot.slane %v1852, 1
      %v1855 = vsel %vm1306, %v1850, %v1854
      %v1857 = vshrl.u32 %v1775, 16
      %v1859 = vshll.u32 %v1775, 16
      %v1861 = vrot.slane %v1859, 1
      %v1862 = vor.u32 %v1857, %v1861
      %v1864 = vshll.u32 %v1815, 16
      %v1866 = vrot.slane %v1864, 1
      %v1867 = vsel %vm1306, %v1862, %v1866
      %v1869 = vshrl.u32 %v1776, 16
      %v1871 = vshll.u32 %v1776, 16
      %v1873 = vrot.slane %v1871, 1
      %v1874 = vor.u32 %v1869, %v1873
      %v1876 = vshll.u32 %v1816, 16
      %v1878 = vrot.slane %v1876, 1
      %v1879 = vsel %vm1306, %v1874, %v1878
      %v1881 = vshrl.u32 %v1777, 16
      %v1883 = vshll.u32 %v1777, 16
      %v1885 = vrot.slane %v1883, 1
      %v1886 = vor.u32 %v1881, %v1885
      %v1888 = vshll.u32 %v1817, 16
      %v1890 = vrot.slane %v1888, 1
      %v1891 = vsel %vm1306, %v1886, %v1890
      %v1893 = vshrl.u32 %v1778, 16
      %v1895 = vshll.u32 %v1778, 16
      %v1897 = vrot.slane %v1895, 1
      %v1898 = vor.u32 %v1893, %v1897
      %v1900 = vshll.u32 %v1818, 16
      %v1902 = vrot.slane %v1900, 1
      %v1903 = vsel %vm1306, %v1898, %v1902
      %v1905 = vshrl.u32 %v1779, 16
      %v1907 = vshll.u32 %v1779, 16
      %v1909 = vrot.slane %v1907, 1
      %v1910 = vor.u32 %v1905, %v1909
      %v1912 = vshll.u32 %v1819, 16
      %v1914 = vrot.slane %v1912, 1
      %v1915 = vsel %vm1306, %v1910, %v1914
      %1916 = vrot.lane.b32.xlu0 %v1831, 112
      %v1917 = vpop.permute.xlu0 %1916
      %1918 = vrot.lane.b32.xlu0 %v1843, 112
      %v1919 = vpop.permute.xlu0 %1918
      %1920 = vrot.lane.b32.xlu0 %v1855, 112
      %v1921 = vpop.permute.xlu0 %1920
      %1922 = vrot.lane.b32.xlu0 %v1867, 112
      %v1923 = vpop.permute.xlu0 %1922
      %1924 = vrot.lane.b32.xlu0 %v1879, 112
      %v1925 = vpop.permute.xlu0 %1924
      %1926 = vrot.lane.b32.xlu0 %v1891, 112
      %v1927 = vpop.permute.xlu0 %1926
      %1928 = vrot.lane.b32.xlu0 %v1903, 112
      %v1929 = vpop.permute.xlu0 %1928
      %1930 = vrot.lane.b32.xlu0 %v1915, 112
      %v1931 = vpop.permute.xlu0 %1930
      %v1940 = vunpack.c.l.b16 %v1234
      %v1941 = vunpack.c.l.b16 %v1235
      %v1942 = vunpack.c.l.b16 %v1236
      %v1943 = vunpack.c.l.b16 %v1237
      %v1944 = vunpack.c.l.b16 %v1238
      %v1945 = vunpack.c.l.b16 %v1239
      %v1946 = vunpack.c.l.b16 %v1240
      %v1947 = vunpack.c.l.b16 %v1241
      %v1948 = vpack.c.b16 %v1757, %v1940
      %v1949 = vpack.c.b16 %v1759, %v1941
      %v1950 = vpack.c.b16 %v1761, %v1942
      %v1951 = vpack.c.b16 %v1763, %v1943
      %v1952 = vpack.c.b16 %v1765, %v1944
      %v1953 = vpack.c.b16 %v1767, %v1945
      %v1954 = vpack.c.b16 %v1769, %v1946
      %v1955 = vpack.c.b16 %v1771, %v1947
      %v1956 = vrot.slane %v1948, 1
      %v1957 = vrot.slane %v1812, 1
      %v1958 = vsel %vm1443, %v1956, %v1957
      %v1959 = vrot.slane %v1949, 1
      %v1960 = vrot.slane %v1813, 1
      %v1961 = vsel %vm1443, %v1959, %v1960
      %v1962 = vrot.slane %v1950, 1
      %v1963 = vrot.slane %v1814, 1
      %v1964 = vsel %vm1443, %v1962, %v1963
      %v1965 = vrot.slane %v1951, 1
      %v1966 = vrot.slane %v1815, 1
      %v1967 = vsel %vm1443, %v1965, %v1966
      %v1968 = vrot.slane %v1952, 1
      %v1969 = vrot.slane %v1816, 1
      %v1970 = vsel %vm1443, %v1968, %v1969
      %v1971 = vrot.slane %v1953, 1
      %v1972 = vrot.slane %v1817, 1
      %v1973 = vsel %vm1443, %v1971, %v1972
      %v1974 = vrot.slane %v1954, 1
      %v1975 = vrot.slane %v1818, 1
      %v1976 = vsel %vm1443, %v1974, %v1975
      %v1977 = vrot.slane %v1955, 1
      %v1978 = vrot.slane %v1819, 1
      %v1979 = vsel %vm1443, %v1977, %v1978
      %vm1980 = vcmask 130048
      %v1982 = vsel %vm1980, %v1274, %v1404
      %v1984 = vsel %vm1980, %v1275, %v1406
      %v1986 = vsel %vm1980, %v1276, %v1408
      %v1988 = vsel %vm1980, %v1277, %v1410
      %v1990 = vsel %vm1980, %v1278, %v1412
      %v1992 = vsel %vm1980, %v1279, %v1414
      %v1994 = vsel %vm1980, %v1280, %v1416
      %v1996 = vsel %vm1980, %v1281, %v1418
      %vm1997 = vcmask 261120
      %v1999 = vsel %vm1997, %v1982, %v1469
      %v2001 = vsel %vm1997, %v1984, %v1471
      %v2003 = vsel %vm1997, %v1986, %v1473
      %v2005 = vsel %vm1997, %v1988, %v1475
      %v2007 = vsel %vm1997, %v1990, %v1477
      %v2009 = vsel %vm1997, %v1992, %v1479
      %v2011 = vsel %vm1997, %v1994, %v1481
      %v2013 = vsel %vm1997, %v1996, %v1483
      %vm2014 = vcmask 392192
      %v2016 = vsel %vm2014, %v1999, %v1525
      %v2018 = vsel %vm2014, %v2001, %v1527
      %v2020 = vsel %vm2014, %v2003, %v1529
      %v2022 = vsel %vm2014, %v2005, %v1531
      %v2024 = vsel %vm2014, %v2007, %v1533
      %v2026 = vsel %vm2014, %v2009, %v1535
      %v2028 = vsel %vm2014, %v2011, %v1537
      %v2030 = vsel %vm2014, %v2013, %v1539
      %vm2031 = vcmask 523264
      %v2033 = vsel %vm2031, %v2016, %v1661
      %v2035 = vsel %vm2031, %v2018, %v1663
      %v2037 = vsel %vm2031, %v2020, %v1665
      %v2039 = vsel %vm2031, %v2022, %v1667
      %v2041 = vsel %vm2031, %v2024, %v1669
      %v2043 = vsel %vm2031, %v2026, %v1671
      %v2045 = vsel %vm2031, %v2028, %v1673
      %v2047 = vsel %vm2031, %v2030, %v1675
      %vm2048 = vcmask 654336
      %v2050 = vsel %vm2048, %v2033, %v1725
      %v2052 = vsel %vm2048, %v2035, %v1727
      %v2054 = vsel %vm2048, %v2037, %v1729
      %v2056 = vsel %vm2048, %v2039, %v1731
      %v2058 = vsel %vm2048, %v2041, %v1733
      %v2060 = vsel %vm2048, %v2043, %v1735
      %v2062 = vsel %vm2048, %v2045, %v1737
      %v2064 = vsel %vm2048, %v2047, %v1739
      %vm2065 = vcmask 785408
      %v2067 = vsel %vm2065, %v2050, %v1781
      %v2069 = vsel %vm2065, %v2052, %v1783
      %v2071 = vsel %vm2065, %v2054, %v1785
      %v2073 = vsel %vm2065, %v2056, %v1787
      %v2075 = vsel %vm2065, %v2058, %v1789
      %v2077 = vsel %vm2065, %v2060, %v1791
      %v2079 = vsel %vm2065, %v2062, %v1793
      %v2081 = vsel %vm2065, %v2064, %v1795
      %vm2082 = vcmask 916480
      %v2084 = vsel %vm2082, %v2067, %v1917
      %v2087 = vsel %vm2082, %v2069, %v1919
      %v2090 = vsel %vm2082, %v2071, %v1921
      %v2093 = vsel %vm2082, %v2073, %v1923
      %v2096 = vsel %vm2082, %v2075, %v1925
      %v2099 = vsel %vm2082, %v2077, %v1927
      %v2102 = vsel %vm2082, %v2079, %v1929
      %v2105 = vsel %vm2082, %v2081, %v1931
      %v2107 = vld [vmem:[%s3] sm:$0xf]
      %v2108 = vld [vmem:[%s3 + $0x4] sm:$0xf]
      %v2109 = vld [vmem:[%s3 + $0x8] sm:$0xf]
      %v2110 = vld [vmem:[%s3 + $0xc] sm:$0xf]
      %v2111 = vld [vmem:[%s3 + $0x10] sm:$0xf]
      %v2112 = vld [vmem:[%s3 + $0x14] sm:$0xf]
      %v2113 = vld [vmem:[%s3 + $0x18] sm:$0xf]
      %v2114 = vld [vmem:[%s3 + $0x1c] sm:$0xf]
      %v2115 = vld [vmem:[%s3 + $0x20] sm:$0xf]
      %v2116 = vld [vmem:[%s3 + $0x24] sm:$0xf]
      %v2117 = vld [vmem:[%s3 + $0x28] sm:$0xf]
      %v2118 = vld [vmem:[%s3 + $0x2c] sm:$0xf]
      %v2119 = vld [vmem:[%s3 + $0x30] sm:$0xf]
      %v2120 = vld [vmem:[%s3 + $0x34] sm:$0xf]
      %v2121 = vld [vmem:[%s3 + $0x38] sm:$0xf]
      %v2122 = vld [vmem:[%s3 + $0x3c] sm:$0xf]
      %v2123 = vld [vmem:[%s3 + $0x40] sm:$0xf]
      %v2124 = vld [vmem:[%s3 + $0x44] sm:$0xf]
      %v2125 = vld [vmem:[%s4] sm:$0x1]
      %v2127 = vlaneseq
      %v2128 = vshrl.u32 %v2127, 7
      %v2129 = vsub.s32 0, %v2128
      %v2130 = vrot.slane %v2125, %v2129
      %v2150 = vunpack.c.l.b16 %v2107
      %v2151 = vunpack.c.l.b16 %v2108
      %v2152 = vunpack.c.l.b16 %v2109
      %v2153 = vunpack.c.l.b16 %v2110
      %v2154 = vunpack.c.l.b16 %v2111
      %v2155 = vunpack.c.l.b16 %v2112
      %v2156 = vunpack.c.l.b16 %v2113
      %v2157 = vunpack.c.l.b16 %v2114
      %v2158 = vunpack.c.l.b16 %v2115
      %v2159 = vunpack.c.l.b16 %v2116
      %v2160 = vunpack.c.l.b16 %v2117
      %v2161 = vunpack.c.l.b16 %v2118
      %v2162 = vunpack.c.l.b16 %v2119
      %v2163 = vunpack.c.l.b16 %v2120
      %v2164 = vunpack.c.l.b16 %v2121
      %v2165 = vunpack.c.l.b16 %v2122
      %v2166 = vunpack.c.l.b16 %v2123
      %v2167 = vunpack.c.l.b16 %v2124
      %v2168 = vpack.c.b16 %v2151, %v2150
      %v2169 = vpack.c.b16 %v2153, %v2152
      %v2170 = vpack.c.b16 %v2155, %v2154
      %v2171 = vpack.c.b16 %v2157, %v2156
      %v2172 = vpack.c.b16 %v2159, %v2158
      %v2173 = vpack.c.b16 %v2161, %v2160
      %v2174 = vpack.c.b16 %v2163, %v2162
      %v2175 = vpack.c.b16 %v2165, %v2164
      %v2176 = vpack.c.b16 %v2167, %v2166
      %v2187 = vsel %vm1980, %v1958, 0
      %v2190 = vsel %vm1980, %v1961, 0
      %v2193 = vsel %vm1980, %v1964, 0
      %v2196 = vsel %vm1980, %v1967, 0
      %v2199 = vsel %vm1980, %v1970, 0
      %v2202 = vsel %vm1980, %v1973, 0
      %v2205 = vsel %vm1980, %v1976, 0
      %v2208 = vsel %vm1980, %v1979, 0
      %2210 = vmatprep.subr.bf16.mxu0 0
      %2211 = vmatpush1.bf16.msra.mxu0 %v2168
      %2212 = vmatprep.subr.bf16.mxu0 0
      %2213 = vmatpush1.bf16.msra.mxu0 %v2169
      %2214 = vmatprep.subr.bf16.mxu0 0
      %2215 = vmatpush1.bf16.msra.mxu0 %v2170
      %2216 = vmatprep.subr.bf16.mxu0 0
      %2217 = vmatpush1.bf16.msra.mxu0 %v2171
      %2218 = vmatprep.subr.bf16.mxu0 0
      %2219 = vmatpush1.bf16.msra.mxu0 %v2172
      %2220 = vmatprep.subr.bf16.mxu0 0
      %2221 = vmatpush1.bf16.msra.mxu0 %v2173
      %2222 = vmatprep.subr.bf16.mxu0 0
      %2223 = vmatpush1.bf16.msra.mxu0 %v2174
      %2224 = vmatprep.subr.bf16.mxu0 0
      %2225 = vmatpush1.bf16.msra.mxu0 %v2175
      %2226 = vmatprep.subr.bf16.mxu0 0
      %2227 = vmatpush1.bf16.msra.mxu0 %v2176
      %2228 = vmatprep.subr.bf16.mxu0 0
      %2229 = vmatpush1.bf16.msra.mxu0 0
      %2230 = vmatprep.subr.bf16.mxu0 0
      %2231 = vmatpush1.bf16.msra.mxu0 0
      %2232 = vmatprep.subr.bf16.mxu0 0
      %2233 = vmatpush1.bf16.msra.mxu0 0
      %2234 = vmatprep.subr.bf16.mxu0 0
      %2235 = vmatpush1.bf16.msra.mxu0 0
      %2236 = vmatprep.subr.bf16.mxu0 0
      %2237 = vmatpush1.bf16.msra.mxu0 0
      %2238 = vmatprep.subr.bf16.mxu0 0
      %2239 = vmatpush1.bf16.msra.mxu0 0
      %2240 = vmatprep.subr.bf16.mxu0 0
      %2241 = vmatpush1.bf16.msra.mxu0 0
      %2242 = vmatprep.mubr.bf16.mxu0 %v2187
      %2243 = vmatmul.mubr.bf16.gmra.mrb[0].mxu0 %v2084
      %v2244 = vpop.f32.mrb[0].mxu0
      %v2245 = vadd.f32 %v2130, %v2244
      %v2246 = vpop.f32.mrb[0].mxu0
      %v2247 = vpop.f32.mrb[0].mxu0
      %v2248 = vadd.f32 %v2130, %v2247
      %v2249 = vpop.f32.mrb[0].mxu0
      %2250 = vmatprep.mubr.bf16.mxu0 %v2190
      %2251 = vmatmul.mubr.bf16.gmra.mrb[0].mxu0 %v2087
      %v2252 = vpop.f32.mrb[0].mxu0
      %v2253 = vadd.f32 %v2130, %v2252
      %v2254 = vpop.f32.mrb[0].mxu0
      %v2255 = vpop.f32.mrb[0].mxu0
      %v2256 = vadd.f32 %v2130, %v2255
      %v2257 = vpop.f32.mrb[0].mxu0
      %2258 = vmatprep.mubr.bf16.mxu0 %v2193
      %2259 = vmatmul.mubr.bf16.gmra.mrb[0].mxu0 %v2090
      %v2260 = vpop.f32.mrb[0].mxu0
      %v2261 = vadd.f32 %v2130, %v2260
      %v2262 = vpop.f32.mrb[0].mxu0
      %v2263 = vpop.f32.mrb[0].mxu0
      %v2264 = vadd.f32 %v2130, %v2263
      %v2265 = vpop.f32.mrb[0].mxu0
      %2266 = vmatprep.mubr.bf16.mxu0 %v2196
      %2267 = vmatmul.mubr.bf16.gmra.mrb[0].mxu0 %v2093
      %v2268 = vpop.f32.mrb[0].mxu0
      %v2269 = vadd.f32 %v2130, %v2268
      %v2270 = vpop.f32.mrb[0].mxu0
      %v2271 = vpop.f32.mrb[0].mxu0
      %v2272 = vadd.f32 %v2130, %v2271
      %v2273 = vpop.f32.mrb[0].mxu0
      %2274 = vmatprep.mubr.bf16.mxu0 %v2199
      %2275 = vmatmul.mubr.bf16.gmra.mrb[0].mxu0 %v2096
      %v2276 = vpop.f32.mrb[0].mxu0
      %v2277 = vadd.f32 %v2130, %v2276
      %v2278 = vpop.f32.mrb[0].mxu0
      %v2279 = vpop.f32.mrb[0].mxu0
      %v2280 = vadd.f32 %v2130, %v2279
      %v2281 = vpop.f32.mrb[0].mxu0
      %2282 = vmatprep.mubr.bf16.mxu0 %v2202
      %2283 = vmatmul.mubr.bf16.gmra.mrb[0].mxu0 %v2099
      %v2284 = vpop.f32.mrb[0].mxu0
      %v2285 = vadd.f32 %v2130, %v2284
      %v2286 = vpop.f32.mrb[0].mxu0
      %v2287 = vpop.f32.mrb[0].mxu0
      %v2288 = vadd.f32 %v2130, %v2287
      %v2289 = vpop.f32.mrb[0].mxu0
      %2290 = vmatprep.mubr.bf16.mxu0 %v2205
      %2291 = vmatmul.mubr.bf16.gmra.mrb[0].mxu0 %v2102
      %v2292 = vpop.f32.mrb[0].mxu0
      %v2293 = vadd.f32 %v2130, %v2292
      %v2294 = vpop.f32.mrb[0].mxu0
      %v2295 = vpop.f32.mrb[0].mxu0
      %v2296 = vadd.f32 %v2130, %v2295
      %v2297 = vpop.f32.mrb[0].mxu0
      %2298 = vmatprep.mubr.bf16.mxu0 %v2208
      %2299 = vmatmul.mubr.bf16.gmra.mrb[0].mxu0 %v2105
      %v2300 = vpop.f32.mrb[0].mxu0
      %v2301 = vadd.f32 %v2130, %v2300
      %v2302 = vpop.f32.mrb[0].mxu0
      %v2303 = vpop.f32.mrb[0].mxu0
      %v2304 = vadd.f32 %v2130, %v2303
      %v2305 = vpop.f32.mrb[0].mxu0
      %2306 = vdwg.mxu0
      %v2307 = vmax.f32 %v2245, 0.0
      %v2308 = vmax.f32 %v2248, 0.0
      %v2309 = vmax.f32 %v2253, 0.0
      %v2310 = vmax.f32 %v2256, 0.0
      %v2311 = vmax.f32 %v2261, 0.0
      %v2312 = vmax.f32 %v2264, 0.0
      %v2313 = vmax.f32 %v2269, 0.0
      %v2314 = vmax.f32 %v2272, 0.0
      %v2315 = vmax.f32 %v2277, 0.0
      %v2316 = vmax.f32 %v2280, 0.0
      %v2317 = vmax.f32 %v2285, 0.0
      %v2318 = vmax.f32 %v2288, 0.0
      %v2319 = vmax.f32 %v2293, 0.0
      %v2320 = vmax.f32 %v2296, 0.0
      %v2321 = vmax.f32 %v2301, 0.0
      %v2322 = vmax.f32 %v2304, 0.0
      %v2323 = vpack.c.bf16 %v2308, %v2307
      %v2324 = vpack.c.bf16 %v2310, %v2309
      %v2325 = vpack.c.bf16 %v2312, %v2311
      %v2326 = vpack.c.bf16 %v2314, %v2313
      %v2327 = vpack.c.bf16 %v2316, %v2315
      %v2328 = vpack.c.bf16 %v2318, %v2317
      %v2329 = vpack.c.bf16 %v2320, %v2319
      %v2330 = vpack.c.bf16 %v2322, %v2321
      %s2331 = smul.u32 %s24, 128
      %s2332 = sshra.s32 %s2331, 3
      %s2333 = sand.u32 %s2331, 7
      %s2334 = smul.addr %s2332, 4
      %s2335 = scalar_lea.vmem %s318, %s2334
      %v2336 = vld [vmem:[%s2335] sm:$0xf]
      %v2337 = vld [vmem:[%s2335 + $0x4] sm:$0xf]
      %v2338 = vld [vmem:[%s2335 + $0x8] sm:$0xf]
      %v2339 = vld [vmem:[%s2335 + $0xc] sm:$0xf]
      %v2340 = vld [vmem:[%s2335 + $0x10] sm:$0xf]
      %v2341 = vld [vmem:[%s2335 + $0x14] sm:$0xf]
      %v2342 = vld [vmem:[%s2335 + $0x18] sm:$0xf]
      %v2343 = vld [vmem:[%s2335 + $0x1c] sm:$0xf]
      %v2344 = vld [vmem:[%s2335 + $0x20] sm:$0xf]
      %v2345 = vld [vmem:[%s2335 + $0x24] sm:$0xf]
      %v2346 = vld [vmem:[%s2335 + $0x28] sm:$0xf]
      %v2347 = vld [vmem:[%s2335 + $0x2c] sm:$0xf]
      %v2348 = vld [vmem:[%s2335 + $0x30] sm:$0xf]
      %v2349 = vld [vmem:[%s2335 + $0x34] sm:$0xf]
      %v2350 = vld [vmem:[%s2335 + $0x38] sm:$0xf]
      %v2351 = vld [vmem:[%s2335 + $0x3c] sm:$0xf]
      %v2352 = vld [vmem:[%s5] sm:$0xf]
      %v2353 = vld [vmem:[%s5 + $0x4] sm:$0xf]
      %v2354 = vld [vmem:[%s6] sm:$0xf]
      %v2371 = vunpack.c.l.b16 %v2336
      %v2372 = vunpack.c.l.b16 %v2337
      %v2373 = vunpack.c.l.b16 %v2338
      %v2374 = vunpack.c.l.b16 %v2339
      %v2375 = vunpack.c.l.b16 %v2340
      %v2376 = vunpack.c.l.b16 %v2341
      %v2377 = vunpack.c.l.b16 %v2342
      %v2378 = vunpack.c.l.b16 %v2343
      %v2379 = vunpack.c.l.b16 %v2344
      %v2380 = vunpack.c.l.b16 %v2345
      %v2381 = vunpack.c.l.b16 %v2346
      %v2382 = vunpack.c.l.b16 %v2347
      %v2383 = vunpack.c.l.b16 %v2348
      %v2384 = vunpack.c.l.b16 %v2349
      %v2385 = vunpack.c.l.b16 %v2350
      %v2386 = vunpack.c.l.b16 %v2351
      %v2387 = vpack.c.b16 %v2372, %v2371
      %v2388 = vpack.c.b16 %v2374, %v2373
      %v2389 = vpack.c.b16 %v2376, %v2375
      %v2390 = vpack.c.b16 %v2378, %v2377
      %v2391 = vpack.c.b16 %v2380, %v2379
      %v2392 = vpack.c.b16 %v2382, %v2381
      %v2393 = vpack.c.b16 %v2384, %v2383
      %v2394 = vpack.c.b16 %v2386, %v2385
      %vm2395 = vcmask 64512
      %v2397 = vsel %vm2395, %v2387, 0
      %v2400 = vsel %vm2395, %v2388, 0
      %v2403 = vsel %vm2395, %v2389, 0
      %v2406 = vsel %vm2395, %v2390, 0
      %v2409 = vsel %vm2395, %v2391, 0
      %v2412 = vsel %vm2395, %v2392, 0
      %v2415 = vsel %vm2395, %v2393, 0
      %v2418 = vsel %vm2395, %v2394, 0
      %vm2420 = vcmask 1043456
      %v2422 = vsel %vm2420, %v2354, 0
      %2424 = vmatprep.subr.bf16.mxu0 0
      %2425 = vmatpush1.bf16.msra.mxu0 %v2422
      %2426 = vmatprep.subr.bf16.mxu0 0
      %2427 = vmatpush1.bf16.msra.mxu0 0
      %2428 = vmatprep.subr.bf16.mxu0 0
      %2429 = vmatpush1.bf16.msra.mxu0 0
      %2430 = vmatprep.subr.bf16.mxu0 0
      %2431 = vmatpush1.bf16.msra.mxu0 0
      %2432 = vmatprep.subr.bf16.mxu0 0
      %2433 = vmatpush1.bf16.msra.mxu0 0
      %2434 = vmatprep.subr.bf16.mxu0 0
      %2435 = vmatpush1.bf16.msra.mxu0 0
      %2436 = vmatprep.subr.bf16.mxu0 0
      %2437 = vmatpush1.bf16.msra.mxu0 0
      %2438 = vmatprep.subr.bf16.mxu0 0
      %2439 = vmatpush1.bf16.msra.mxu0 0
      %2440 = vmatprep.subr.bf16.mxu0 0
      %2441 = vmatpush1.bf16.msra.mxu0 0
      %2442 = vmatprep.subr.bf16.mxu0 0
      %2443 = vmatpush1.bf16.msra.mxu0 0
      %2444 = vmatprep.subr.bf16.mxu0 0
      %2445 = vmatpush1.bf16.msra.mxu0 0
      %2446 = vmatprep.subr.bf16.mxu0 0
      %2447 = vmatpush1.bf16.msra.mxu0 0
      %2448 = vmatprep.subr.bf16.mxu0 0
      %2449 = vmatpush1.bf16.msra.mxu0 0
      %2450 = vmatprep.subr.bf16.mxu0 0
      %2451 = vmatpush1.bf16.msra.mxu0 0
      %2452 = vmatprep.subr.bf16.mxu0 0
      %2453 = vmatpush1.bf16.msra.mxu0 0
      %2454 = vmatprep.subr.bf16.mxu0 0
      %2455 = vmatpush1.bf16.msra.mxu0 0
      %2456 = vmatprep.mubr.bf16.mxu0 0
      %2457 = vmatmul.mubr.bf16.gmra.mrb[0].mxu0 %v2397
      %v2458 = vpop.f32.mrb[0].mxu0
      %v2459 = vadd.f32 0.0, %v2458
      %v2460 = vpop.f32.mrb[0].mxu0
      %v2461 = vpop.f32.mrb[0].mxu0
      %v2462 = vadd.f32 0.0, %v2461
      %v2463 = vpop.f32.mrb[0].mxu0
      %2464 = vmatprep.mubr.bf16.mxu0 0
      %2465 = vmatmul.mubr.bf16.gmra.mrb[0].mxu0 %v2400
      %v2466 = vpop.f32.mrb[0].mxu0
      %v2467 = vadd.f32 0.0, %v2466
      %v2468 = vpop.f32.mrb[0].mxu0
      %v2469 = vpop.f32.mrb[0].mxu0
      %v2470 = vadd.f32 0.0, %v2469
      %v2471 = vpop.f32.mrb[0].mxu0
      %2472 = vmatprep.mubr.bf16.mxu0 0
      %2473 = vmatmul.mubr.bf16.gmra.mrb[0].mxu0 %v2403
      %v2474 = vpop.f32.mrb[0].mxu0
      %v2475 = vadd.f32 0.0, %v2474
      %v2476 = vpop.f32.mrb[0].mxu0
      %v2477 = vpop.f32.mrb[0].mxu0
      %v2478 = vadd.f32 0.0, %v2477
      %v2479 = vpop.f32.mrb[0].mxu0
      %2480 = vmatprep.mubr.bf16.mxu0 0
      %2481 = vmatmul.mubr.bf16.gmra.mrb[0].mxu0 %v2406
      %v2482 = vpop.f32.mrb[0].mxu0
      %v2483 = vadd.f32 0.0, %v2482
      %v2484 = vpop.f32.mrb[0].mxu0
      %v2485 = vpop.f32.mrb[0].mxu0
      %v2486 = vadd.f32 0.0, %v2485
      %v2487 = vpop.f32.mrb[0].mxu0
      %2488 = vmatprep.mubr.bf16.mxu0 0
      %2489 = vmatmul.mubr.bf16.gmra.mrb[0].mxu0 %v2409
      %v2490 = vpop.f32.mrb[0].mxu0
      %v2491 = vadd.f32 0.0, %v2490
      %v2492 = vpop.f32.mrb[0].mxu0
      %v2493 = vpop.f32.mrb[0].mxu0
      %v2494 = vadd.f32 0.0, %v2493
      %v2495 = vpop.f32.mrb[0].mxu0
      %2496 = vmatprep.mubr.bf16.mxu0 0
      %2497 = vmatmul.mubr.bf16.gmra.mrb[0].mxu0 %v2412
      %v2498 = vpop.f32.mrb[0].mxu0
      %v2499 = vadd.f32 0.0, %v2498
      %v2500 = vpop.f32.mrb[0].mxu0
      %v2501 = vpop.f32.mrb[0].mxu0
      %v2502 = vadd.f32 0.0, %v2501
      %v2503 = vpop.f32.mrb[0].mxu0
      %2504 = vmatprep.mubr.bf16.mxu0 0
      %2505 = vmatmul.mubr.bf16.gmra.mrb[0].mxu0 %v2415
      %v2506 = vpop.f32.mrb[0].mxu0
      %v2507 = vadd.f32 0.0, %v2506
      %v2508 = vpop.f32.mrb[0].mxu0
      %v2509 = vpop.f32.mrb[0].mxu0
      %v2510 = vadd.f32 0.0, %v2509
      %v2511 = vpop.f32.mrb[0].mxu0
      %2512 = vmatprep.mubr.bf16.mxu0 0
      %2513 = vmatmul.mubr.bf16.gmra.mrb[0].mxu0 %v2418
      %v2514 = vpop.f32.mrb[0].mxu0
      %v2515 = vadd.f32 0.0, %v2514
      %v2516 = vpop.f32.mrb[0].mxu0
      %v2517 = vpop.f32.mrb[0].mxu0
      %v2518 = vadd.f32 0.0, %v2517
      %v2519 = vpop.f32.mrb[0].mxu0
      %2520 = vdwg.mxu0
      %v2523 = vunpack.c.l.b16 %v2352
      %v2524 = vunpack.c.l.b16 %v2353
      %v2525 = vpack.c.b16 %v2524, %v2523
      %v2528 = vsel %vm1980, %v2323, 0
      %v2531 = vsel %vm1980, %v2324, 0
      %v2534 = vsel %vm1980, %v2325, 0
      %v2537 = vsel %vm1980, %v2326, 0
      %v2540 = vsel %vm1980, %v2327, 0
      %v2543 = vsel %vm1980, %v2328, 0
      %v2546 = vsel %vm1980, %v2329, 0
      %v2549 = vsel %vm1980, %v2330, 0
      %2551 = vmatprep.subr.bf16.mxu0 0
      %2552 = vmatpush1.bf16.msra.mxu0 %v2525
      %2553 = vmatprep.subr.bf16.mxu0 0
      %2554 = vmatpush1.bf16.msra.mxu0 0
      %2555 = vmatprep.subr.bf16.mxu0 0
      %2556 = vmatpush1.bf16.msra.mxu0 0
      %2557 = vmatprep.subr.bf16.mxu0 0
      %2558 = vmatpush1.bf16.msra.mxu0 0
      %2559 = vmatprep.subr.bf16.mxu0 0
      %2560 = vmatpush1.bf16.msra.mxu0 0
      %2561 = vmatprep.subr.bf16.mxu0 0
      %2562 = vmatpush1.bf16.msra.mxu0 0
      %2563 = vmatprep.subr.bf16.mxu0 0
      %2564 = vmatpush1.bf16.msra.mxu0 0
      %2565 = vmatprep.subr.bf16.mxu0 0
      %2566 = vmatpush1.bf16.msra.mxu0 0
      %2567 = vmatprep.subr.bf16.mxu0 0
      %2568 = vmatpush1.bf16.msra.mxu0 0
      %2569 = vmatprep.subr.bf16.mxu0 0
      %2570 = vmatpush1.bf16.msra.mxu0 0
      %2571 = vmatprep.subr.bf16.mxu0 0
      %2572 = vmatpush1.bf16.msra.mxu0 0
      %2573 = vmatprep.subr.bf16.mxu0 0
      %2574 = vmatpush1.bf16.msra.mxu0 0
      %2575 = vmatprep.subr.bf16.mxu0 0
      %2576 = vmatpush1.bf16.msra.mxu0 0
      %2577 = vmatprep.subr.bf16.mxu0 0
      %2578 = vmatpush1.bf16.msra.mxu0 0
      %2579 = vmatprep.subr.bf16.mxu0 0
      %2580 = vmatpush1.bf16.msra.mxu0 0
      %2581 = vmatprep.subr.bf16.mxu0 0
      %2582 = vmatpush1.bf16.msra.mxu0 0
      %2583 = vmatprep.mubr.bf16.mxu0 0
      %2584 = vmatmul.mubr.bf16.gmra.mrb[0].mxu0 %v2528
      %v2585 = vpop.f32.mrb[0].mxu0
      %v2586 = vadd.f32 %v2459, %v2585
      %v2587 = vpop.f32.mrb[0].mxu0
      %v2588 = vpop.f32.mrb[0].mxu0
      %v2589 = vadd.f32 %v2462, %v2588
      %v2590 = vpop.f32.mrb[0].mxu0
      %2591 = vmatprep.mubr.bf16.mxu0 0
      %2592 = vmatmul.mubr.bf16.gmra.mrb[0].mxu0 %v2531
      %v2593 = vpop.f32.mrb[0].mxu0
      %v2594 = vadd.f32 %v2467, %v2593
      %v2595 = vpop.f32.mrb[0].mxu0
      %v2596 = vpop.f32.mrb[0].mxu0
      %v2597 = vadd.f32 %v2470, %v2596
      %v2598 = vpop.f32.mrb[0].mxu0
      %2599 = vmatprep.mubr.bf16.mxu0 0
      %2600 = vmatmul.mubr.bf16.gmra.mrb[0].mxu0 %v2534
      %v2601 = vpop.f32.mrb[0].mxu0
      %v2602 = vadd.f32 %v2475, %v2601
      %v2603 = vpop.f32.mrb[0].mxu0
      %v2604 = vpop.f32.mrb[0].mxu0
      %v2605 = vadd.f32 %v2478, %v2604
      %v2606 = vpop.f32.mrb[0].mxu0
      %2607 = vmatprep.mubr.bf16.mxu0 0
      %2608 = vmatmul.mubr.bf16.gmra.mrb[0].mxu0 %v2537
      %v2609 = vpop.f32.mrb[0].mxu0
      %v2610 = vadd.f32 %v2483, %v2609
      %v2611 = vpop.f32.mrb[0].mxu0
      %v2612 = vpop.f32.mrb[0].mxu0
      %v2613 = vadd.f32 %v2486, %v2612
      %v2614 = vpop.f32.mrb[0].mxu0
      %2615 = vmatprep.mubr.bf16.mxu0 0
      %2616 = vmatmul.mubr.bf16.gmra.mrb[0].mxu0 %v2540
      %v2617 = vpop.f32.mrb[0].mxu0
      %v2618 = vadd.f32 %v2491, %v2617
      %v2619 = vpop.f32.mrb[0].mxu0
      %v2620 = vpop.f32.mrb[0].mxu0
      %v2621 = vadd.f32 %v2494, %v2620
      %v2622 = vpop.f32.mrb[0].mxu0
      %2623 = vmatprep.mubr.bf16.mxu0 0
      %2624 = vmatmul.mubr.bf16.gmra.mrb[0].mxu0 %v2543
      %v2625 = vpop.f32.mrb[0].mxu0
      %v2626 = vadd.f32 %v2499, %v2625
      %v2627 = vpop.f32.mrb[0].mxu0
      %v2628 = vpop.f32.mrb[0].mxu0
      %v2629 = vadd.f32 %v2502, %v2628
      %v2630 = vpop.f32.mrb[0].mxu0
      %2631 = vmatprep.mubr.bf16.mxu0 0
      %2632 = vmatmul.mubr.bf16.gmra.mrb[0].mxu0 %v2546
      %v2633 = vpop.f32.mrb[0].mxu0
      %v2634 = vadd.f32 %v2507, %v2633
      %v2635 = vpop.f32.mrb[0].mxu0
      %v2636 = vpop.f32.mrb[0].mxu0
      %v2637 = vadd.f32 %v2510, %v2636
      %v2638 = vpop.f32.mrb[0].mxu0
      %2639 = vmatprep.mubr.bf16.mxu0 0
      %2640 = vmatmul.mubr.bf16.gmra.mrb[0].mxu0 %v2549
      %v2641 = vpop.f32.mrb[0].mxu0
      %v2642 = vadd.f32 %v2515, %v2641
      %v2643 = vpop.f32.mrb[0].mxu0
      %v2644 = vpop.f32.mrb[0].mxu0
      %v2645 = vadd.f32 %v2518, %v2644
      %v2646 = vpop.f32.mrb[0].mxu0
      %2647 = vdwg.mxu0
      %v2648 = vld [vmem:[%s7] sm:$0x1]
      %v2650 = vlaneseq
      %v2651 = vshrl.u32 %v2650, 7
      %v2652 = vsub.s32 0, %v2651
      %v2653 = vrot.slane %v2648, %v2652
      %v2655 = vadd.f32 %v2586, %v2653
      %v2656 = vadd.f32 %v2589, %v2653
      %v2657 = vadd.f32 %v2594, %v2653
      %v2658 = vadd.f32 %v2597, %v2653
      %v2659 = vadd.f32 %v2602, %v2653
      %v2660 = vadd.f32 %v2605, %v2653
      %v2661 = vadd.f32 %v2610, %v2653
      %v2662 = vadd.f32 %v2613, %v2653
      %v2663 = vadd.f32 %v2618, %v2653
      %v2664 = vadd.f32 %v2621, %v2653
      %v2665 = vadd.f32 %v2626, %v2653
      %v2666 = vadd.f32 %v2629, %v2653
      %v2667 = vadd.f32 %v2634, %v2653
      %v2668 = vadd.f32 %v2637, %v2653
      %v2669 = vadd.f32 %v2642, %v2653
      %v2670 = vadd.f32 %v2645, %v2653
      %v2671 = vmax.f32 %v2655, 0.0
      %v2672 = vmax.f32 %v2656, 0.0
      %v2673 = vmax.f32 %v2657, 0.0
      %v2674 = vmax.f32 %v2658, 0.0
      %v2675 = vmax.f32 %v2659, 0.0
      %v2676 = vmax.f32 %v2660, 0.0
      %v2677 = vmax.f32 %v2661, 0.0
      %v2678 = vmax.f32 %v2662, 0.0
      %v2679 = vmax.f32 %v2663, 0.0
      %v2680 = vmax.f32 %v2664, 0.0
      %v2681 = vmax.f32 %v2665, 0.0
      %v2682 = vmax.f32 %v2666, 0.0
      %v2683 = vmax.f32 %v2667, 0.0
      %v2684 = vmax.f32 %v2668, 0.0
      %v2685 = vmax.f32 %v2669, 0.0
      %v2686 = vmax.f32 %v2670, 0.0
      %v2687 = vpack.c.bf16 %v2672, %v2671
      %v2688 = vpack.c.bf16 %v2674, %v2673
      %v2689 = vpack.c.bf16 %v2676, %v2675
      %v2690 = vpack.c.bf16 %v2678, %v2677
      %v2691 = vpack.c.bf16 %v2680, %v2679
      %v2692 = vpack.c.bf16 %v2682, %v2681
      %v2693 = vpack.c.bf16 %v2684, %v2683
      %v2694 = vpack.c.bf16 %v2686, %v2685
      %v2703 = vunpack.c.l.b16 %v2687
      %v2704 = vunpack.c.h.b16 %v2687
      %v2705 = vunpack.c.l.b16 %v2688
      %v2706 = vunpack.c.h.b16 %v2688
      %v2707 = vunpack.c.l.b16 %v2689
      %v2708 = vunpack.c.h.b16 %v2689
      %v2709 = vunpack.c.l.b16 %v2690
      %v2710 = vunpack.c.h.b16 %v2690
      %v2711 = vunpack.c.l.b16 %v2691
      %v2712 = vunpack.c.h.b16 %v2691
      %v2713 = vunpack.c.l.b16 %v2692
      %v2714 = vunpack.c.h.b16 %v2692
      %v2715 = vunpack.c.l.b16 %v2693
      %v2716 = vunpack.c.h.b16 %v2693
      %v2717 = vunpack.c.l.b16 %v2694
      %v2718 = vunpack.c.h.b16 %v2694
      %v2719 = vpack.c.b16 %v2703, %v2703
      %v2720 = vpack.c.b16 %v2704, %v2704
      %v2721 = vpack.c.b16 %v2705, %v2705
      %v2722 = vpack.c.b16 %v2706, %v2706
      %v2723 = vpack.c.b16 %v2707, %v2707
      %v2724 = vpack.c.b16 %v2708, %v2708
      %v2725 = vpack.c.b16 %v2709, %v2709
      %v2726 = vpack.c.b16 %v2710, %v2710
      %v2727 = vpack.c.b16 %v2711, %v2711
      %v2728 = vpack.c.b16 %v2712, %v2712
      %v2729 = vpack.c.b16 %v2713, %v2713
      %v2730 = vpack.c.b16 %v2714, %v2714
      %v2731 = vpack.c.b16 %v2715, %v2715
      %v2732 = vpack.c.b16 %v2716, %v2716
      %v2733 = vpack.c.b16 %v2717, %v2717
      %v2734 = vpack.c.b16 %v2718, %v2718
      %vm2751 = vcmask 257024
      %2752 = vst.msk [vmem:[%s327] sm:$0xf] %vm2751, %v2719
      %2753 = vst.msk [vmem:[%s327 + $0x4] sm:$0xf] %vm2751, %v2720
      %2754 = vst.msk [vmem:[%s327 + $0x8] sm:$0xf] %vm2751, %v2721
      %2755 = vst.msk [vmem:[%s327 + $0xc] sm:$0xf] %vm2751, %v2722
      %2756 = vst.msk [vmem:[%s327 + $0x10] sm:$0xf] %vm2751, %v2723
      %2757 = vst.msk [vmem:[%s327 + $0x14] sm:$0xf] %vm2751, %v2724
      %2758 = vst.msk [vmem:[%s327 + $0x18] sm:$0xf] %vm2751, %v2725
      %2759 = vst.msk [vmem:[%s327 + $0x1c] sm:$0xf] %vm2751, %v2726
      %2760 = vst.msk [vmem:[%s327 + $0x20] sm:$0xf] %vm2751, %v2727
      %2761 = vst.msk [vmem:[%s327 + $0x24] sm:$0xf] %vm2751, %v2728
      %2762 = vst.msk [vmem:[%s327 + $0x28] sm:$0xf] %vm2751, %v2729
      %2763 = vst.msk [vmem:[%s327 + $0x2c] sm:$0xf] %vm2751, %v2730
      %2764 = vst.msk [vmem:[%s327 + $0x30] sm:$0xf] %vm2751, %v2731
      %2765 = vst.msk [vmem:[%s327 + $0x34] sm:$0xf] %vm2751, %v2732
      %2766 = vst.msk [vmem:[%s327 + $0x38] sm:$0xf] %vm2751, %v2733
      %2767 = vst.msk [vmem:[%s327 + $0x3c] sm:$0xf] %vm2751, %v2734
      %s2768 = smul.u32 16, %s24
      %p2769 = scmp.lt.s32.totalorder %s23, 1
      %s2770 = scalar_select %p2769, %s23, 1
      %p2771 = scmp.lt.s32.totalorder %s2768, 31
      %s2772 = scalar_select %p2771, %s2768, 31
      %s2773 = smul.addr %s2770, 32
      %s2774 = sadd.s32 %s2772, %s2773
      %s2775 = smul.addr %s2774, 4
      %s2776 = scalar_lea.vmem %s8, %s2775
      // Predicated region
      $region57: #{block_forward.1} parent=51 // pred_check
        %p2777 = pneg %p224
      $region58: #{block_forward.1} parent=51 // pred_check_branch
        %2779 = sbr.rel (%p2777) target = $region60
      $region59: #{block_forward.1} parent=51 // pred_region
        %s2780 = smul.u32 16, %s24
      $region60: #{block_forward.1} parent=51 // pred_fallthru
        _
    $region52: #{block_forward.1} parent=5 // pred_fallthru
      _
    %p2781 = scmp.le.s32.totalorder 2, %s14
    // Predicated region
    $region61: #{block_forward.1} parent=5 // pred_check
      %p2782 = pneg %p2781
    $region62: #{block_forward.1} parent=5 // pred_check_branch
      %2784 = sbr.rel (%p2782) target = $region64
    $region63: #{block_forward.1} parent=5 // pred_region
      %s2785 = ssub.s32 %s14, 2
      // Predicated region
      $region65: #{block_forward.1} parent=63 // pred_check
        %p2786 = pneg %p230
      $region66: #{block_forward.1} parent=63 // pred_check_branch
        %2788 = sbr.rel (%p2786) target = $region68
      $region67: #{block_forward.1} parent=63 // pred_region
        %s2789 = smul.u32 16, %s26
        %p2790 = scmp.lt.s32.totalorder %s25, 1
        %s2791 = scalar_select %p2790, %s25, 1
        %p2792 = scmp.lt.s32.totalorder %s2789, 31
        %s2793 = scalar_select %p2792, %s2789, 31
        %s2794 = smul.addr %s2791, 32
        %s2795 = sadd.s32 %s2793, %s2794
        %s2796 = smul.addr %s2795, 4
        %s2797 = scalar_lea.vmem %s8, %s2796
      $region68: #{block_forward.1} parent=63 // pred_fallthru
        _
    $region64: #{block_forward.1} parent=5 // pred_fallthru
      _
  $region6: #{block_forward.1} parent=0 // loop_footer
    %s18 = sadd.s32 1, %s14
  $region7: #{block_forward.1} parent=0 // loop_footer_branch
    %13 = sbr.rel target = $region3
  $region8: #{block_forward.1} parent=0 // loop_exit
    _

</llo_original>
